<compile_context>
chip_gen: v7x
topology: tpu7x:2x2x1
jax: 0.10.0
libtpu: 0.0.40
codegen_flags: <defaults>
</compile_context>

<pallas_src>
import math

import jax
import jax.numpy as jnp
from jax import lax
from jax.experimental import pallas as pl
from jax.experimental.pallas import tpu as pltpu

# padded contraction dims (lane/sublane friendly)
K_VIT = 8        # surrogate-ViT feature dim:   3 -> 8
K_LOGITS = 1024  # ViT logit dim:            1000 -> 1024
K_HID = 512      # fc hidden dim:             400 -> 512


def _gelu(x):
    # exact erf-based GELU, matching torch.nn.GELU() default
    return 0.5 * x * (1.0 + lax.erf(x * (1.0 / math.sqrt(2.0))))


def _bf16(x):
    return x.astype(jnp.bfloat16)


# ----------------------- Pallas kernel (fused hot path) -----------------------
def cide_kernel(feats_ref, wv_ref, bv_ref,
                w1_ref, b1_ref, w2_ref, b2_ref,
                emb_ref, w3_ref, b3_ref, w4_ref, b4_ref, gamma_ref,
                out_ref):
    # surrogate ViT classifier head (fused prologue): feats @ w_vit + b_vit
    feats = feats_ref[...]                                                 # (B, 8)  f32
    logits = jnp.dot(_bf16(feats), wv_ref[...],
                     preferred_element_type=jnp.float32) + bv_ref[...]     # (B, 1024)

    # self.fc: Linear(1000, 400) -> GELU -> Linear(400, NC)   (K dims padded)
    h = jnp.dot(_bf16(logits), w1_ref[...],
                preferred_element_type=jnp.float32) + b1_ref[...]          # (B, 512)
    h = _gelu(h)
    cl = jnp.dot(_bf16(h), w2_ref[...],
                 preferred_element_type=jnp.float32) + b2_ref[...]         # (B, NC)

    # self.m = Softmax(dim=1); divide moved to EUP via approx reciprocal
    m = jnp.max(cl, axis=1, keepdims=True)
    e = jnp.exp(cl - m)
    probs = e * pl.reciprocal(jnp.sum(e, axis=1, keepdims=True), approx=True)

    # class_probs @ self.embeddings
    ce = jnp.dot(_bf16(probs), emb_ref[...],
                 preferred_element_type=jnp.float32)                       # (B, D)

    # EmbeddingAdapter: Linear(D,D) -> GELU -> Linear(D,D); residual with gamma
    t = _gelu(jnp.dot(_bf16(ce), w3_ref[...],
                      preferred_element_type=jnp.float32) + b3_ref[...])
    et = jnp.dot(_bf16(t), w4_ref[...],
                 preferred_element_type=jnp.float32) + b4_ref[...]
    out_ref[...] = ce + gamma_ref[...] * et                                # (B, D)


def cide_head(feats_padded, kp):
    """Runs the fused CIDE head in a single Pallas call (all operands in VMEM)."""
    B = feats_padded.shape[0]
    D = kp["gamma"].shape[1]
    args = (
        feats_padded,
        kp["w_vit"], kp["b_vit"],
        kp["w1"], kp["b1"], kp["w2"], kp["b2"],
        kp["emb"], kp["w3"], kp["b3"], kp["w4"], kp["b4"], kp["gamma"],
    )
    vmem = pl.BlockSpec(memory_space=pltpu.MemorySpace.VMEM)
    out = pl.pallas_call(
        cide_kernel,
        out_shape=jax.ShapeDtypeStruct((B, D), jnp.float32),
        in_specs=[vmem] * len(args),
        out_specs=vmem,
    )(*args)
    # repeat(texts, 'n c -> n b c', b=1)
    return out.reshape(B, 1, D)


# ------------------------------- plain-JAX glue -------------------------------
def pad_to_make_square(x):
    # x: (B, 3, H, W) float in [-1, 1]  (NCHW, like torch)
    y = 255.0 * ((x + 1.0) / 2.0)
    y = jnp.transpose(y, (0, 2, 3, 1))                       # NHWC
    _, _, h, w = x.shape
    if w > h:
        y = jnp.pad(y, ((0, 0), (0, w - h), (0, 0), (0, 0)))
    else:
        y = jnp.pad(y, ((0, 0), (0, 0), (0, h - w), (0, 0)))
    return y.astype(jnp.int32)


def surrogate_vit_feats(y_square):
    # Deterministic stand-in feature pool for the frozen pretrained ViT.
    feats = jnp.mean(y_square.astype(jnp.float32) / 255.0, axis=(1, 2))    # (B, 3)
    return jnp.pad(feats, ((0, 0), (0, K_VIT - feats.shape[1])))           # (B, 8)


def cide_forward(x, kernel_params):
    y = pad_to_make_square(x)
    feats = surrogate_vit_feats(y)
    return cide_head(feats, kernel_params)


# ------------------------------ parameter builders -----------------------------
def build_raw_params(key, NC, D):
    ks = jax.random.split(key, 11)
    return {
        # surrogate ViT classifier (stand-in for the frozen pretrained backbone)
        "w_vit": 0.05 * jax.random.normal(ks[0], (3, 1000), jnp.float32),
        "b_vit": 0.01 * jax.random.normal(ks[1], (1000,), jnp.float32),
        # self.fc = Linear(1000, 400) -> GELU -> Linear(400, NC)
        "w1": 0.02 * jax.random.normal(ks[2], (1000, 400), jnp.float32),
        "b1": 0.01 * jax.random.normal(ks[3], (400,), jnp.float32),
        "w2": 0.05 * jax.random.normal(ks[4], (400, NC), jnp.float32),
        "b2": 0.01 * jax.random.normal(ks[5], (NC,), jnp.float32),
        # self.embeddings = Parameter(randn(NC, D))
        "emb": jax.random.normal(ks[6], (NC, D), jnp.float32),
        # EmbeddingAdapter.fc = Linear(D, D) -> GELU -> Linear(D, D)
        "w3": 0.1 * jax.random.normal(ks[7], (D, D), jnp.float32),
        "b3": 0.01 * jax.random.normal(ks[8], (D,), jnp.float32),
        "w4": 0.1 * jax.random.normal(ks[9], (D, D), jnp.float32),
        "b4": 0.01 * jax.random.normal(ks[10], (D,), jnp.float32),
        # self.gamma = Parameter(ones(D) * 1e-4)
        "gamma": jnp.full((D,), 1e-4, jnp.float32),
    }


def prepare_kernel_params(raw):
    """Zero-pad contraction dims and store weight matrices in bf16."""
    def pad2(a, rows, cols):
        return jnp.pad(a, ((0, rows - a.shape[0]), (0, cols - a.shape[1])))

    NC = raw["w2"].shape[1]
    D = raw["w3"].shape[0]
    return {
        "w_vit": pad2(raw["w_vit"], K_VIT, K_LOGITS).astype(jnp.bfloat16),
        "b_vit": jnp.pad(raw["b_vit"], (0, K_LOGITS - raw["b_vit"].shape[0])).reshape(1, K_LOGITS),
        "w1": pad2(raw["w1"], K_LOGITS, K_HID).astype(jnp.bfloat16),
        "b1": jnp.pad(raw["b1"], (0, K_HID - raw["b1"].shape[0])).reshape(1, K_HID),
        "w2": pad2(raw["w2"], K_HID, NC).astype(jnp.bfloat16),
        "b2": raw["b2"].reshape(1, NC),
        "emb": raw["emb"].astype(jnp.bfloat16),
        "w3": raw["w3"].astype(jnp.bfloat16),
        "b3": raw["b3"].reshape(1, D),
        "w4": raw["w4"].astype(jnp.bfloat16),
        "b4": raw["b4"].reshape(1, D),
        "gamma": raw["gamma"].reshape(1, D),
    }


# ------------------------------- references (jnp) -------------------------------
def cide_ref_emulated(feats_padded, kp):
    """Pure-jnp replica of the kernel math (same bf16/padded weights, exact div)."""
    def dot(a, w):
        return jnp.dot(a.astype(jnp.bfloat16), w, preferred_element_type=jnp.float32)

    logits = dot(feats_padded, kp["w_vit"]) + kp["b_vit"]
    h = _gelu(dot(logits, kp["w1"]) + kp["b1"])
    cl = dot(h, kp["w2"]) + kp["b2"]
    probs = jax.nn.softmax(cl, axis=1)
    ce = dot(probs, kp["emb"])
    t = _gelu(dot(ce, kp["w3"]) + kp["b3"])
    et = dot(t, kp["w4"]) + kp["b4"]
    return (ce + kp["gamma"] * et)[:, None, :]


def cide_ref_f32(x, raw):
    """Original-module math in plain f32 with the unpadded weights."""
    y = pad_to_make_square(x)
    feats = jnp.mean(y.astype(jnp.float32) / 255.0, axis=(1, 2))
    logits = feats @ raw["w_vit"] + raw["b_vit"]
    h = _gelu(logits @ raw["w1"] + raw["b1"])
    cl = h @ raw["w2"] + raw["b2"]
    probs = jax.nn.softmax(cl, axis=1)
    ce = probs @ raw["emb"]
    t = _gelu(ce @ raw["w3"] + raw["b3"])
    et = t @ raw["w4"] + raw["b4"]
    return (ce + raw["gamma"] * et)[:, None, :]


# ----------------------------------- main -----------------------------------
if __name__ == "__main__":
    B, C, H, W = 2, 3, 16, 16          # image input (NCHW)
    NC = 32                            # args.no_of_classes
    D = 64                             # emb_dim

    key = jax.random.PRNGKey(0)
    pkey, xkey = jax.random.split(key)

    raw_params = build_raw_params(pkey, NC, D)
    kernel_params = prepare_kernel_params(raw_params)

    x = jax.random.uniform(xkey, (B, C, H, W), jnp.float32, minval=-1.0, maxval=1.0)

    forward = jax.jit(cide_forward)
    out = jax.block_until_ready(forward(x, kernel_params))
    assert out.shape == (B, 1, D), out.shape

    # 1) check against a pure-JAX replica of the exact kernel math (bf16 weights,
    #    padded K dims) -- differences come only from MXU/EUP rounding.
    feats = surrogate_vit_feats(pad_to_make_square(x))
    ref_emul = cide_ref_emulated(feats, kernel_params)
    err_emul = float(jnp.max(jnp.abs(out - ref_emul)))
    assert jnp.allclose(out, ref_emul, atol=2e-3, rtol=2e-3), err_emul

    # 2) check against the original f32 head math (unpadded weights); tolerance
    #    loosened deliberately to cover the bf16 weight storage.
    ref_f32 = cide_ref_f32(x, raw_params)
    err_f32 = float(jnp.max(jnp.abs(out - ref_f32)))
    assert jnp.allclose(out, ref_f32, atol=2e-2, rtol=2e-2), err_f32

    print("KERNEL_OK")
</pallas_src>

<mosaic_0001>
module attributes {stable_mosaic.version = 11 : i64} {
  func.func @cide_kernel(%arg0: memref<2x8xf32, #tpu.memory_space<vmem>>, %arg1: memref<8x1024xbf16, #tpu.memory_space<vmem>>, %arg2: memref<1x1024xf32, #tpu.memory_space<vmem>>, %arg3: memref<1024x512xbf16, #tpu.memory_space<vmem>>, %arg4: memref<1x512xf32, #tpu.memory_space<vmem>>, %arg5: memref<512x32xbf16, #tpu.memory_space<vmem>>, %arg6: memref<1x32xf32, #tpu.memory_space<vmem>>, %arg7: memref<32x64xbf16, #tpu.memory_space<vmem>>, %arg8: memref<64x64xbf16, #tpu.memory_space<vmem>>, %arg9: memref<1x64xf32, #tpu.memory_space<vmem>>, %arg10: memref<64x64xbf16, #tpu.memory_space<vmem>>, %arg11: memref<1x64xf32, #tpu.memory_space<vmem>>, %arg12: memref<1x64xf32, #tpu.memory_space<vmem>>, %arg13: memref<2x64xf32, #tpu.memory_space<vmem>>) attributes {dimension_semantics = [], scalar_prefetch = 0 : i64, scratch_operands = 0 : i64, tpu.core_type = #tpu.core_type<tc>} {
    %c0 = arith.constant 0 : index
    %c0_0 = arith.constant 0 : index
    %0 = vector.load %arg0[%c0, %c0_0] : memref<2x8xf32, #tpu.memory_space<vmem>>, vector<2x8xf32>
    %1 = arith.truncf %0 : vector<2x8xf32> to vector<2x8xbf16>
    %c0_1 = arith.constant 0 : index
    %c0_2 = arith.constant 0 : index
    %2 = vector.load %arg1[%c0_1, %c0_2] : memref<8x1024xbf16, #tpu.memory_space<vmem>>, vector<8x1024xbf16>
    %cst = arith.constant dense<0.000000e+00> : vector<2x1024xf32>
    %3 = tpu.matmul %1, %2, %cst {dimension_numbers = #tpu.dot_dimension_numbers<[1], [0], [0], [1], [0, 0, 1, 1], [], []>} : vector<2x8xbf16>, vector<8x1024xbf16>, vector<2x1024xf32> -> vector<2x1024xf32>
    %c0_3 = arith.constant 0 : index
    %c0_4 = arith.constant 0 : index
    %4 = vector.load %arg2[%c0_3, %c0_4] : memref<1x1024xf32, #tpu.memory_space<vmem>>, vector<1x1024xf32>
    %5 = vector.broadcast %4 : vector<1x1024xf32> to vector<2x1024xf32>
    %6 = arith.addf %3, %5 : vector<2x1024xf32>
    %7 = arith.truncf %6 : vector<2x1024xf32> to vector<2x1024xbf16>
    %c0_5 = arith.constant 0 : index
    %c0_6 = arith.constant 0 : index
    %8 = vector.load %arg3[%c0_5, %c0_6] : memref<1024x512xbf16, #tpu.memory_space<vmem>>, vector<1024x512xbf16>
    %cst_7 = arith.constant dense<0.000000e+00> : vector<2x512xf32>
    %9 = tpu.matmul %7, %8, %cst_7 {dimension_numbers = #tpu.dot_dimension_numbers<[1], [0], [0], [1], [0, 0, 1, 1], [], []>} : vector<2x1024xbf16>, vector<1024x512xbf16>, vector<2x512xf32> -> vector<2x512xf32>
    %c0_8 = arith.constant 0 : index
    %c0_9 = arith.constant 0 : index
    %10 = vector.load %arg4[%c0_8, %c0_9] : memref<1x512xf32, #tpu.memory_space<vmem>>, vector<1x512xf32>
    %11 = vector.broadcast %10 : vector<1x512xf32> to vector<2x512xf32>
    %12 = arith.addf %9, %11 : vector<2x512xf32>
    %cst_10 = arith.constant 5.000000e-01 : f32
    %13 = vector.broadcast %cst_10 : f32 to vector<2x512xf32>
    %14 = arith.mulf %13, %12 : vector<2x512xf32>
    %cst_11 = arith.constant 0.707106769 : f32
    %15 = vector.broadcast %cst_11 : f32 to vector<2x512xf32>
    %16 = arith.mulf %12, %15 : vector<2x512xf32>
    %17 = math.erf %16 : vector<2x512xf32>
    %cst_12 = arith.constant 1.000000e+00 : f32
    %18 = vector.broadcast %cst_12 : f32 to vector<2x512xf32>
    %19 = arith.addf %18, %17 : vector<2x512xf32>
    %20 = arith.mulf %14, %19 : vector<2x512xf32>
    %21 = arith.truncf %20 : vector<2x512xf32> to vector<2x512xbf16>
    %c0_13 = arith.constant 0 : index
    %c0_14 = arith.constant 0 : index
    %22 = vector.load %arg5[%c0_13, %c0_14] : memref<512x32xbf16, #tpu.memory_space<vmem>>, vector<512x32xbf16>
    %cst_15 = arith.constant dense<0.000000e+00> : vector<2x32xf32>
    %23 = tpu.matmul %21, %22, %cst_15 {dimension_numbers = #tpu.dot_dimension_numbers<[1], [0], [0], [1], [0, 0, 1, 1], [], []>} : vector<2x512xbf16>, vector<512x32xbf16>, vector<2x32xf32> -> vector<2x32xf32>
    %c0_16 = arith.constant 0 : index
    %c0_17 = arith.constant 0 : index
    %24 = vector.load %arg6[%c0_16, %c0_17] : memref<1x32xf32, #tpu.memory_space<vmem>>, vector<1x32xf32>
    %25 = vector.broadcast %24 : vector<1x32xf32> to vector<2x32xf32>
    %26 = arith.addf %23, %25 : vector<2x32xf32>
    %cst_18 = arith.constant dense<0xFF800000> : vector<2xf32>
    %27 = vector.multi_reduction <maximumf>, %26, %cst_18 [1] : vector<2x32xf32> to vector<2xf32>
    %28 = vector.shape_cast %27 : vector<2xf32> to vector<2x1xf32>
    %29 = vector.broadcast %28 : vector<2x1xf32> to vector<2x32xf32>
    %30 = arith.subf %26, %29 : vector<2x32xf32>
    %31 = math.exp %30 : vector<2x32xf32>
    %cst_19 = arith.constant dense<0.000000e+00> : vector<2xf32>
    %32 = vector.multi_reduction <add>, %31, %cst_19 [1] : vector<2x32xf32> to vector<2xf32>
    %33 = vector.shape_cast %32 : vector<2xf32> to vector<2x1xf32>
    %34 = tpu.reciprocal %33 {approx = true} : vector<2x1xf32> -> vector<2x1xf32>
    %35 = vector.broadcast %34 : vector<2x1xf32> to vector<2x32xf32>
    %36 = arith.mulf %31, %35 : vector<2x32xf32>
    %37 = arith.truncf %36 : vector<2x32xf32> to vector<2x32xbf16>
    %c0_20 = arith.constant 0 : index
    %c0_21 = arith.constant 0 : index
    %38 = vector.load %arg7[%c0_20, %c0_21] : memref<32x64xbf16, #tpu.memory_space<vmem>>, vector<32x64xbf16>
    %cst_22 = arith.constant dense<0.000000e+00> : vector<2x64xf32>
    %39 = tpu.matmul %37, %38, %cst_22 {dimension_numbers = #tpu.dot_dimension_numbers<[1], [0], [0], [1], [0, 0, 1, 1], [], []>} : vector<2x32xbf16>, vector<32x64xbf16>, vector<2x64xf32> -> vector<2x64xf32>
    %40 = arith.truncf %39 : vector<2x64xf32> to vector<2x64xbf16>
    %c0_23 = arith.constant 0 : index
    %c0_24 = arith.constant 0 : index
    %41 = vector.load %arg8[%c0_23, %c0_24] : memref<64x64xbf16, #tpu.memory_space<vmem>>, vector<64x64xbf16>
    %cst_25 = arith.constant dense<0.000000e+00> : vector<2x64xf32>
    %42 = tpu.matmul %40, %41, %cst_25 {dimension_numbers = #tpu.dot_dimension_numbers<[1], [0], [0], [1], [0, 0, 1, 1], [], []>} : vector<2x64xbf16>, vector<64x64xbf16>, vector<2x64xf32> -> vector<2x64xf32>
    %c0_26 = arith.constant 0 : index
    %c0_27 = arith.constant 0 : index
    %43 = vector.load %arg9[%c0_26, %c0_27] : memref<1x64xf32, #tpu.memory_space<vmem>>, vector<1x64xf32>
    %44 = vector.broadcast %43 : vector<1x64xf32> to vector<2x64xf32>
    %45 = arith.addf %42, %44 : vector<2x64xf32>
    %cst_28 = arith.constant 5.000000e-01 : f32
    %46 = vector.broadcast %cst_28 : f32 to vector<2x64xf32>
    %47 = arith.mulf %46, %45 : vector<2x64xf32>
    %cst_29 = arith.constant 0.707106769 : f32
    %48 = vector.broadcast %cst_29 : f32 to vector<2x64xf32>
    %49 = arith.mulf %45, %48 : vector<2x64xf32>
    %50 = math.erf %49 : vector<2x64xf32>
    %cst_30 = arith.constant 1.000000e+00 : f32
    %51 = vector.broadcast %cst_30 : f32 to vector<2x64xf32>
    %52 = arith.addf %51, %50 : vector<2x64xf32>
    %53 = arith.mulf %47, %52 : vector<2x64xf32>
    %54 = arith.truncf %53 : vector<2x64xf32> to vector<2x64xbf16>
    %c0_31 = arith.constant 0 : index
    %c0_32 = arith.constant 0 : index
    %55 = vector.load %arg10[%c0_31, %c0_32] : memref<64x64xbf16, #tpu.memory_space<vmem>>, vector<64x64xbf16>
    %cst_33 = arith.constant dense<0.000000e+00> : vector<2x64xf32>
    %56 = tpu.matmul %54, %55, %cst_33 {dimension_numbers = #tpu.dot_dimension_numbers<[1], [0], [0], [1], [0, 0, 1, 1], [], []>} : vector<2x64xbf16>, vector<64x64xbf16>, vector<2x64xf32> -> vector<2x64xf32>
    %c0_34 = arith.constant 0 : index
    %c0_35 = arith.constant 0 : index
    %57 = vector.load %arg11[%c0_34, %c0_35] : memref<1x64xf32, #tpu.memory_space<vmem>>, vector<1x64xf32>
    %58 = vector.broadcast %57 : vector<1x64xf32> to vector<2x64xf32>
    %59 = arith.addf %56, %58 : vector<2x64xf32>
    %c0_36 = arith.constant 0 : index
    %c0_37 = arith.constant 0 : index
    %60 = vector.load %arg12[%c0_36, %c0_37] : memref<1x64xf32, #tpu.memory_space<vmem>>, vector<1x64xf32>
    %61 = vector.broadcast %60 : vector<1x64xf32> to vector<2x64xf32>
    %62 = arith.mulf %61, %59 : vector<2x64xf32>
    %63 = arith.addf %39, %62 : vector<2x64xf32>
    %c0_38 = arith.constant 0 : index
    %c0_39 = arith.constant 0 : index
    %64 = vector.load %arg13[%c0_38, %c0_39] : memref<2x64xf32, #tpu.memory_space<vmem>>, vector<2x64xf32>
    tpu.vector_store %arg13[%c0_38, %c0_39], %63 {strides = array<i32>} : memref<2x64xf32, #tpu.memory_space<vmem>>, vector<2x64xf32>,
    return
  }
}

</mosaic_0001>

<llo_original>
// kernel: cide_forward.1
$region0: #{cide_forward.1}
  #allocation0 [shape = 'u32[]', space=smem, size = 0x4, offset = 0x4, fixed_abs, tag = 'smem constant byte address 0x4 - core index']
  #allocation1 [shape = 'u32[144,128]{1,0:T(1,128)}', space=vmem, size = 0x12000, scoped, tag = 'internal scratch']
  %s0 = inlined_call_operand.vmem [shape: f32[2,8], index: 0, kind: input, shape index: {}]
  %s1 = inlined_call_operand.vmem [shape: bf16[8,1024], index: 1, kind: input, shape index: {}]
  %s2 = inlined_call_operand.vmem [shape: f32[1,1024], index: 2, kind: input, shape index: {}]
  %s3 = inlined_call_operand.hbm [shape: bf16[1024,512], index: 3, kind: input, shape index: {}]
  %s4 = inlined_call_operand.vmem [shape: f32[1,512], index: 4, kind: input, shape index: {}]
  %s5 = inlined_call_operand.vmem [shape: bf16[512,32], index: 5, kind: input, shape index: {}]
  %s6 = inlined_call_operand.vmem [shape: f32[1,32], index: 6, kind: input, shape index: {}]
  %s7 = inlined_call_operand.vmem [shape: bf16[32,64], index: 7, kind: input, shape index: {}]
  %s8 = inlined_call_operand.vmem [shape: bf16[64,64], index: 8, kind: input, shape index: {}]
  %s9 = inlined_call_operand.vmem [shape: f32[1,64], index: 9, kind: input, shape index: {}]
  %s10 = inlined_call_operand.vmem [shape: bf16[64,64], index: 10, kind: input, shape index: {}]
  %s11 = inlined_call_operand.vmem [shape: f32[1,64], index: 11, kind: input, shape index: {}]
  %s12 = inlined_call_operand.vmem [shape: f32[1,64], index: 12, kind: input, shape index: {}]
  %s13 = inlined_call_operand.hbm [shape: f32[2,64], index: 13, kind: output, shape index: {}]
  %s14 = sld [smem:[#allocation0]]
  $region66: #{cide_forward.1} parent=0
    _
  %s16 = ssub.s32 1, %s14
  %s17 = scalar_select 0, %s16, %s14
  $region1: #{cide_forward.1} parent=0
    #allocation2 [shape = 'u8[1048576]{0}', space=vmem, size = 0x100000, scoped, tag = 'input window, operand 3, single buffered']
    #allocation3 [shape = 's32[1]{0}', space=sflag, size = 0x4, scoped, tag = 'scoped memory for cide_forward.1']
    #allocation4 [shape = 's32[1]{0}', space=sflag, size = 0x4, scoped, tag = 'scoped memory for cide_forward.1']
    #allocation5 [shape = 'u8[1024]{0}', space=vmem, size = 0x400, scoped, tag = 'output window, operand 0, single buffered']
    %18 = vsyncpa [#allocation3], 0
    %19 = vsyncpa [#allocation4], 0
    // Predicated region
    $region2: #{cide_forward.1} parent=1 // pred_check
      _
    $region3: #{cide_forward.1} parent=1 // pred_check_branch
      %21 = sbr.rel (0) target = $region5
    $region4: #{cide_forward.1} parent=1 // pred_region
      _
    $region5: #{cide_forward.1} parent=1 // pred_fallthru
      _
    // Predicated region
    $region6: #{cide_forward.1} parent=1 // pred_check
      _
    $region7: #{cide_forward.1} parent=1 // pred_check_branch
      %23 = sbr.rel (0) target = $region9
    $region8: #{cide_forward.1} parent=1 // pred_region
      _
    $region9: #{cide_forward.1} parent=1 // pred_fallthru
      _
    // Predicated region
    $region10: #{cide_forward.1} parent=1 // pred_check
      _
    $region11: #{cide_forward.1} parent=1 // pred_check_branch
      %25 = sbr.rel (0) target = $region13
    $region12: #{cide_forward.1} parent=1 // pred_region
      _
    $region13: #{cide_forward.1} parent=1 // pred_fallthru
      _
    // Predicated region
    $region14: #{cide_forward.1} parent=1 // pred_check
      _
    $region15: #{cide_forward.1} parent=1 // pred_check_branch
      %27 = sbr.rel (0) target = $region17
    $region16: #{cide_forward.1} parent=1 // pred_region
      %s29 = ssub.s32 32768, 32768
      %30 = vsyncadd [#allocation3], %s29
      %s31 = sshll.u32 [#allocation2], 4
      %s32 = int_to_ptr.vmem [resolvable:$true] %s31
      %37 = dma.hbm_to_vmem [thread:$0]  %s3, 32768, %s32, [#allocation3], 256, 256, 16
    $region17: #{cide_forward.1} parent=1 // pred_fallthru
      _
    // Predicated region
    $region18: #{cide_forward.1} parent=1 // pred_check
      _
    $region19: #{cide_forward.1} parent=1 // pred_check_branch
      %39 = sbr.rel (0) target = $region21
    $region20: #{cide_forward.1} parent=1 // pred_region
      _
    $region21: #{cide_forward.1} parent=1 // pred_fallthru
      _
    // Predicated region
    $region22: #{cide_forward.1} parent=1 // pred_check
      _
    $region23: #{cide_forward.1} parent=1 // pred_check_branch
      %41 = sbr.rel (0) target = $region25
    $region24: #{cide_forward.1} parent=1 // pred_region
      _
    $region25: #{cide_forward.1} parent=1 // pred_fallthru
      _
    // Predicated region
    $region26: #{cide_forward.1} parent=1 // pred_check
      _
    $region27: #{cide_forward.1} parent=1 // pred_check_branch
      %43 = sbr.rel (0) target = $region29
    $region28: #{cide_forward.1} parent=1 // pred_region
      _
    $region29: #{cide_forward.1} parent=1 // pred_fallthru
      _
    // Predicated region
    $region30: #{cide_forward.1} parent=1 // pred_check
      _
    $region31: #{cide_forward.1} parent=1 // pred_check_branch
      %45 = sbr.rel (0) target = $region33
    $region32: #{cide_forward.1} parent=1 // pred_region
      _
    $region33: #{cide_forward.1} parent=1 // pred_fallthru
      _
    // Predicated region
    $region34: #{cide_forward.1} parent=1 // pred_check
      _
    $region35: #{cide_forward.1} parent=1 // pred_check_branch
      %47 = sbr.rel (0) target = $region37
    $region36: #{cide_forward.1} parent=1 // pred_region
      _
    $region37: #{cide_forward.1} parent=1 // pred_fallthru
      _
    // Predicated region
    $region38: #{cide_forward.1} parent=1 // pred_check
      _
    $region39: #{cide_forward.1} parent=1 // pred_check_branch
      %49 = sbr.rel (0) target = $region41
    $region40: #{cide_forward.1} parent=1 // pred_region
      _
    $region41: #{cide_forward.1} parent=1 // pred_fallthru
      _
    // Predicated region
    $region42: #{cide_forward.1} parent=1 // pred_check
      _
    $region43: #{cide_forward.1} parent=1 // pred_check_branch
      %51 = sbr.rel (0) target = $region45
    $region44: #{cide_forward.1} parent=1 // pred_region
      _
    $region45: #{cide_forward.1} parent=1 // pred_fallthru
      _
    // Predicated region
    $region46: #{cide_forward.1} parent=1 // pred_check
      _
    $region47: #{cide_forward.1} parent=1 // pred_check_branch
      %53 = sbr.rel (0) target = $region49
    $region48: #{cide_forward.1} parent=1 // pred_region
      _
    $region49: #{cide_forward.1} parent=1 // pred_fallthru
      _
    // Predicated region
    $region50: #{cide_forward.1} parent=1 // pred_check
      _
    $region51: #{cide_forward.1} parent=1 // pred_check_branch
      %55 = sbr.rel (0) target = $region53
    $region52: #{cide_forward.1} parent=1 // pred_region
      _
    $region53: #{cide_forward.1} parent=1 // pred_fallthru
      _
    // Predicated region
    $region54: #{cide_forward.1} parent=1 // pred_check
      _
    $region55: #{cide_forward.1} parent=1 // pred_check_branch
      %57 = sbr.rel (0) target = $region57
    $region56: #{cide_forward.1} parent=1 // pred_region
      %58 = dma.done [#allocation3], 32768
    $region57: #{cide_forward.1} parent=1 // pred_fallthru
      _
    %v60 = vld [vmem:[%s0] sm:$0x3]
    %v61 = vpack.c.bf16 %v60, %v60
    %v62 = vld [vmem:[%s1] sm:$0xff]
    %v63 = vld [vmem:[%s1 + $0x8] sm:$0xff]
    %v64 = vld [vmem:[%s1 + $0x10] sm:$0xff]
    %v65 = vld [vmem:[%s1 + $0x18] sm:$0xff]
    %v66 = vld [vmem:[%s2] sm:$0xff]
    %v68 = vlaneseq
    %v69 = vshrl.u32 %v68, 7
    %v70 = vsub.s32 0, %v69
    %v71 = vrot.slane %v66, %v70
    %v72 = vlaneseq
    %v73 = vshrl.u32 %v72, 7
    %v74 = vsub.s32 1, %v73
    %v75 = vrot.slane %v66, %v74
    %v76 = vlaneseq
    %v77 = vshrl.u32 %v76, 7
    %v78 = vsub.s32 2, %v77
    %v79 = vrot.slane %v66, %v78
    %v80 = vlaneseq
    %v81 = vshrl.u32 %v80, 7
    %v82 = vsub.s32 3, %v81
    %v83 = vrot.slane %v66, %v82
    %v84 = vlaneseq
    %v85 = vshrl.u32 %v84, 7
    %v86 = vsub.s32 4, %v85
    %v87 = vrot.slane %v66, %v86
    %v88 = vlaneseq
    %v89 = vshrl.u32 %v88, 7
    %v90 = vsub.s32 5, %v89
    %v91 = vrot.slane %v66, %v90
    %v92 = vlaneseq
    %v93 = vshrl.u32 %v92, 7
    %v94 = vsub.s32 6, %v93
    %v95 = vrot.slane %v66, %v94
    %v96 = vlaneseq
    %v97 = vshrl.u32 %v96, 7
    %v98 = vsub.s32 7, %v97
    %v99 = vrot.slane %v66, %v98
    %v112 = vunpack.c.l.b16 %v62
    %v113 = vunpack.c.h.b16 %v62
    %v114 = vunpack.c.l.b16 %v63
    %v115 = vunpack.c.h.b16 %v63
    %v116 = vunpack.c.l.b16 %v64
    %v117 = vunpack.c.h.b16 %v64
    %v118 = vunpack.c.l.b16 %v65
    %v119 = vunpack.c.h.b16 %v65
    %v120 = vpack.c.b16 %v112, %v112
    %v121 = vpack.c.b16 %v113, %v113
    %v122 = vpack.c.b16 %v114, %v114
    %v123 = vpack.c.b16 %v115, %v115
    %v124 = vpack.c.b16 %v116, %v116
    %v125 = vpack.c.b16 %v117, %v117
    %v126 = vpack.c.b16 %v118, %v118
    %v127 = vpack.c.b16 %v119, %v119
    %vm128 = vcmask 64512
    %v130 = vsel %vm128, %v61, 0
    %vm132 = vcmask 1043456
    %v134 = vsel %vm132, %v120, 0
    %v137 = vsel %vm132, %v121, 0
    %v140 = vsel %vm132, %v122, 0
    %v143 = vsel %vm132, %v123, 0
    %v146 = vsel %vm132, %v124, 0
    %v149 = vsel %vm132, %v125, 0
    %v152 = vsel %vm132, %v126, 0
    %v155 = vsel %vm132, %v127, 0
    %157 = vmatprep.subr.bf16.mxu0 %v137
    %158 = vmatpush1.bf16.msra.mxu0 %v134
    %159 = vmatprep.subr.bf16.mxu0 0
    %160 = vmatpush1.bf16.msra.mxu0 0
    %161 = vmatprep.subr.bf16.mxu0 0
    %162 = vmatpush1.bf16.msra.mxu0 0
    %163 = vmatprep.subr.bf16.mxu0 0
    %164 = vmatpush1.bf16.msra.mxu0 0
    %165 = vmatprep.subr.bf16.mxu0 0
    %166 = vmatpush1.bf16.msra.mxu0 0
    %167 = vmatprep.subr.bf16.mxu0 0
    %168 = vmatpush1.bf16.msra.mxu0 0
    %169 = vmatprep.subr.bf16.mxu0 0
    %170 = vmatpush1.bf16.msra.mxu0 0
    %171 = vmatprep.subr.bf16.mxu0 0
    %172 = vmatpush1.bf16.msra.mxu0 0
    %173 = vmatprep.subr.bf16.mxu0 0
    %174 = vmatpush1.bf16.msra.mxu0 0
    %175 = vmatprep.subr.bf16.mxu0 0
    %176 = vmatpush1.bf16.msra.mxu0 0
    %177 = vmatprep.subr.bf16.mxu0 0
    %178 = vmatpush1.bf16.msra.mxu0 0
    %179 = vmatprep.subr.bf16.mxu0 0
    %180 = vmatpush1.bf16.msra.mxu0 0
    %181 = vmatprep.subr.bf16.mxu0 0
    %182 = vmatpush1.bf16.msra.mxu0 0
    %183 = vmatprep.subr.bf16.mxu0 0
    %184 = vmatpush1.bf16.msra.mxu0 0
    %185 = vmatprep.subr.bf16.mxu0 0
    %186 = vmatpush1.bf16.msra.mxu0 0
    %187 = vmatprep.subr.bf16.mxu0 0
    %188 = vmatpush1.bf16.msra.mxu0 0
    %189 = vmatprep.mubr.bf16.mxu0 0
    %190 = vmatmul.mubr.bf16.gmra.mrb[0].mxu0 %v130
    %v191 = vpop.f32.mrb[0].mxu0
    %v192 = vadd.f32 %v71, %v191
    %v193 = vpop.f32.mrb[0].mxu0
    %v194 = vadd.f32 %v75, %v193
    %v195 = vpop.f32.mrb[0].mxu0
    %v196 = vpop.f32.mrb[0].mxu0
    %197 = vdwg.mxu0
    %198 = vmatprep.subr.bf16.mxu0 %v143
    %199 = vmatpush1.bf16.msra.mxu0 %v140
    %200 = vmatprep.subr.bf16.mxu0 0
    %201 = vmatpush1.bf16.msra.mxu0 0
    %202 = vmatprep.subr.bf16.mxu0 0
    %203 = vmatpush1.bf16.msra.mxu0 0
    %204 = vmatprep.subr.bf16.mxu0 0
    %205 = vmatpush1.bf16.msra.mxu0 0
    %206 = vmatprep.subr.bf16.mxu0 0
    %207 = vmatpush1.bf16.msra.mxu0 0
    %208 = vmatprep.subr.bf16.mxu0 0
    %209 = vmatpush1.bf16.msra.mxu0 0
    %210 = vmatprep.subr.bf16.mxu0 0
    %211 = vmatpush1.bf16.msra.mxu0 0
    %212 = vmatprep.subr.bf16.mxu0 0
    %213 = vmatpush1.bf16.msra.mxu0 0
    %214 = vmatprep.subr.bf16.mxu0 0
    %215 = vmatpush1.bf16.msra.mxu0 0
    %216 = vmatprep.subr.bf16.mxu0 0
    %217 = vmatpush1.bf16.msra.mxu0 0
    %218 = vmatprep.subr.bf16.mxu0 0
    %219 = vmatpush1.bf16.msra.mxu0 0
    %220 = vmatprep.subr.bf16.mxu0 0
    %221 = vmatpush1.bf16.msra.mxu0 0
    %222 = vmatprep.subr.bf16.mxu0 0
    %223 = vmatpush1.bf16.msra.mxu0 0
    %224 = vmatprep.subr.bf16.mxu0 0
    %225 = vmatpush1.bf16.msra.mxu0 0
    %226 = vmatprep.subr.bf16.mxu0 0
    %227 = vmatpush1.bf16.msra.mxu0 0
    %228 = vmatprep.subr.bf16.mxu0 0
    %229 = vmatpush1.bf16.msra.mxu0 0
    %230 = vmatprep.mubr.bf16.mxu0 0
    %231 = vmatmul.mubr.bf16.gmra.mrb[0].mxu0 %v130
    %v232 = vpop.f32.mrb[0].mxu0
    %v233 = vadd.f32 %v79, %v232
    %v234 = vpop.f32.mrb[0].mxu0
    %v235 = vadd.f32 %v83, %v234
    %v236 = vpop.f32.mrb[0].mxu0
    %v237 = vpop.f32.mrb[0].mxu0
    %238 = vdwg.mxu0
    %239 = vmatprep.subr.bf16.mxu0 %v149
    %240 = vmatpush1.bf16.msra.mxu0 %v146
    %241 = vmatprep.subr.bf16.mxu0 0
    %242 = vmatpush1.bf16.msra.mxu0 0
    %243 = vmatprep.subr.bf16.mxu0 0
    %244 = vmatpush1.bf16.msra.mxu0 0
    %245 = vmatprep.subr.bf16.mxu0 0
    %246 = vmatpush1.bf16.msra.mxu0 0
    %247 = vmatprep.subr.bf16.mxu0 0
    %248 = vmatpush1.bf16.msra.mxu0 0
    %249 = vmatprep.subr.bf16.mxu0 0
    %250 = vmatpush1.bf16.msra.mxu0 0
    %251 = vmatprep.subr.bf16.mxu0 0
    %252 = vmatpush1.bf16.msra.mxu0 0
    %253 = vmatprep.subr.bf16.mxu0 0
    %254 = vmatpush1.bf16.msra.mxu0 0
    %255 = vmatprep.subr.bf16.mxu0 0
    %256 = vmatpush1.bf16.msra.mxu0 0
    %257 = vmatprep.subr.bf16.mxu0 0
    %258 = vmatpush1.bf16.msra.mxu0 0
    %259 = vmatprep.subr.bf16.mxu0 0
    %260 = vmatpush1.bf16.msra.mxu0 0
    %261 = vmatprep.subr.bf16.mxu0 0
    %262 = vmatpush1.bf16.msra.mxu0 0
    %263 = vmatprep.subr.bf16.mxu0 0
    %264 = vmatpush1.bf16.msra.mxu0 0
    %265 = vmatprep.subr.bf16.mxu0 0
    %266 = vmatpush1.bf16.msra.mxu0 0
    %267 = vmatprep.subr.bf16.mxu0 0
    %268 = vmatpush1.bf16.msra.mxu0 0
    %269 = vmatprep.subr.bf16.mxu0 0
    %270 = vmatpush1.bf16.msra.mxu0 0
    %271 = vmatprep.mubr.bf16.mxu0 0
    %272 = vmatmul.mubr.bf16.gmra.mrb[0].mxu0 %v130
    %v273 = vpop.f32.mrb[0].mxu0
    %v274 = vadd.f32 %v87, %v273
    %v275 = vpop.f32.mrb[0].mxu0
    %v276 = vadd.f32 %v91, %v275
    %v277 = vpop.f32.mrb[0].mxu0
    %v278 = vpop.f32.mrb[0].mxu0
    %279 = vdwg.mxu0
    %280 = vmatprep.subr.bf16.mxu0 %v155
    %281 = vmatpush1.bf16.msra.mxu0 %v152
    %282 = vmatprep.subr.bf16.mxu0 0
    %283 = vmatpush1.bf16.msra.mxu0 0
    %284 = vmatprep.subr.bf16.mxu0 0
    %285 = vmatpush1.bf16.msra.mxu0 0
    %286 = vmatprep.subr.bf16.mxu0 0
    %287 = vmatpush1.bf16.msra.mxu0 0
    %288 = vmatprep.subr.bf16.mxu0 0
    %289 = vmatpush1.bf16.msra.mxu0 0
    %290 = vmatprep.subr.bf16.mxu0 0
    %291 = vmatpush1.bf16.msra.mxu0 0
    %292 = vmatprep.subr.bf16.mxu0 0
    %293 = vmatpush1.bf16.msra.mxu0 0
    %294 = vmatprep.subr.bf16.mxu0 0
    %295 = vmatpush1.bf16.msra.mxu0 0
    %296 = vmatprep.subr.bf16.mxu0 0
    %297 = vmatpush1.bf16.msra.mxu0 0
    %298 = vmatprep.subr.bf16.mxu0 0
    %299 = vmatpush1.bf16.msra.mxu0 0
    %300 = vmatprep.subr.bf16.mxu0 0
    %301 = vmatpush1.bf16.msra.mxu0 0
    %302 = vmatprep.subr.bf16.mxu0 0
    %303 = vmatpush1.bf16.msra.mxu0 0
    %304 = vmatprep.subr.bf16.mxu0 0
    %305 = vmatpush1.bf16.msra.mxu0 0
    %306 = vmatprep.subr.bf16.mxu0 0
    %307 = vmatpush1.bf16.msra.mxu0 0
    %308 = vmatprep.subr.bf16.mxu0 0
    %309 = vmatpush1.bf16.msra.mxu0 0
    %310 = vmatprep.subr.bf16.mxu0 0
    %311 = vmatpush1.bf16.msra.mxu0 0
    %312 = vmatprep.mubr.bf16.mxu0 0
    %313 = vmatmul.mubr.bf16.gmra.mrb[0].mxu0 %v130
    %v314 = vpop.f32.mrb[0].mxu0
    %v315 = vadd.f32 %v95, %v314
    %v316 = vpop.f32.mrb[0].mxu0
    %v317 = vadd.f32 %v99, %v316
    %v318 = vpop.f32.mrb[0].mxu0
    %v319 = vpop.f32.mrb[0].mxu0
    %320 = vdwg.mxu0
    %v321 = vpack.c.bf16 %v192, %v192
    %v322 = vpack.c.bf16 %v194, %v194
    %v323 = vpack.c.bf16 %v233, %v233
    %v324 = vpack.c.bf16 %v235, %v235
    %v325 = vpack.c.bf16 %v274, %v274
    %v326 = vpack.c.bf16 %v276, %v276
    %v327 = vpack.c.bf16 %v315, %v315
    %v328 = vpack.c.bf16 %v317, %v317
    %v329 = vld [vmem:[#allocation2] sm:$0xff]
    %v330 = vld [vmem:[#allocation2 + $0x8] sm:$0xff]
    %v331 = vld [vmem:[#allocation2 + $0x10] sm:$0xff]
    %v332 = vld [vmem:[#allocation2 + $0x18] sm:$0xff]
    %v333 = vld [vmem:[#allocation2 + $0x20] sm:$0xff]
    %v334 = vld [vmem:[#allocation2 + $0x28] sm:$0xff]
    %v335 = vld [vmem:[#allocation2 + $0x30] sm:$0xff]
    %v336 = vld [vmem:[#allocation2 + $0x38] sm:$0xff]
    %v337 = vld [vmem:[#allocation2 + $0x40] sm:$0xff]
    %v338 = vld [vmem:[#allocation2 + $0x48] sm:$0xff]
    %v339 = vld [vmem:[#allocation2 + $0x50] sm:$0xff]
    %v340 = vld [vmem:[#allocation2 + $0x58] sm:$0xff]
    %v341 = vld [vmem:[#allocation2 + $0x60] sm:$0xff]
    %v342 = vld [vmem:[#allocation2 + $0x68] sm:$0xff]
    %v343 = vld [vmem:[#allocation2 + $0x70] sm:$0xff]
    %v344 = vld [vmem:[#allocation2 + $0x78] sm:$0xff]
    %v345 = vld [vmem:[#allocation2 + $0x80] sm:$0xff]
    %v346 = vld [vmem:[#allocation2 + $0x88] sm:$0xff]
    %v347 = vld [vmem:[#allocation2 + $0x90] sm:$0xff]
    %v348 = vld [vmem:[#allocation2 + $0x98] sm:$0xff]
    %v349 = vld [vmem:[#allocation2 + $0xa0] sm:$0xff]
    %v350 = vld [vmem:[#allocation2 + $0xa8] sm:$0xff]
    %v351 = vld [vmem:[#allocation2 + $0xb0] sm:$0xff]
    %v352 = vld [vmem:[#allocation2 + $0xb8] sm:$0xff]
    %v353 = vld [vmem:[#allocation2 + $0xc0] sm:$0xff]
    %v354 = vld [vmem:[#allocation2 + $0xc8] sm:$0xff]
    %v355 = vld [vmem:[#allocation2 + $0xd0] sm:$0xff]
    %v356 = vld [vmem:[#allocation2 + $0xd8] sm:$0xff]
    %v357 = vld [vmem:[#allocation2 + $0xe0] sm:$0xff]
    %v358 = vld [vmem:[#allocation2 + $0xe8] sm:$0xff]
    %v359 = vld [vmem:[#allocation2 + $0xf0] sm:$0xff]
    %v360 = vld [vmem:[#allocation2 + $0xf8] sm:$0xff]
    %v361 = vld [vmem:[#allocation2 + $0x100] sm:$0xff]
    %v362 = vld [vmem:[#allocation2 + $0x108] sm:$0xff]
    %v363 = vld [vmem:[#allocation2 + $0x110] sm:$0xff]
    %v364 = vld [vmem:[#allocation2 + $0x118] sm:$0xff]
    %v365 = vld [vmem:[#allocation2 + $0x120] sm:$0xff]
    %v366 = vld [vmem:[#allocation2 + $0x128] sm:$0xff]
    %v367 = vld [vmem:[#allocation2 + $0x130] sm:$0xff]
    %v368 = vld [vmem:[#allocation2 + $0x138] sm:$0xff]
    %v369 = vld [vmem:[#allocation2 + $0x140] sm:$0xff]
    %v370 = vld [vmem:[#allocation2 + $0x148] sm:$0xff]
    %v371 = vld [vmem:[#allocation2 + $0x150] sm:$0xff]
    %v372 = vld [vmem:[#allocation2 + $0x158] sm:$0xff]
    %v373 = vld [vmem:[#allocation2 + $0x160] sm:$0xff]
    %v374 = vld [vmem:[#allocation2 + $0x168] sm:$0xff]
    %v375 = vld [vmem:[#allocation2 + $0x170] sm:$0xff]
    %v376 = vld [vmem:[#allocation2 + $0x178] sm:$0xff]
    %v377 = vld [vmem:[#allocation2 + $0x180] sm:$0xff]
    %v378 = vld [vmem:[#allocation2 + $0x188] sm:$0xff]
    %v379 = vld [vmem:[#allocation2 + $0x190] sm:$0xff]
    %v380 = vld [vmem:[#allocation2 + $0x198] sm:$0xff]
    %v381 = vld [vmem:[#allocation2 + $0x1a0] sm:$0xff]
    %v382 = vld [vmem:[#allocation2 + $0x1a8] sm:$0xff]
    %v383 = vld [vmem:[#allocation2 + $0x1b0] sm:$0xff]
    %v384 = vld [vmem:[#allocation2 + $0x1b8] sm:$0xff]
    %v385 = vld [vmem:[#allocation2 + $0x1c0] sm:$0xff]
    %v386 = vld [vmem:[#allocation2 + $0x1c8] sm:$0xff]
    %v387 = vld [vmem:[#allocation2 + $0x1d0] sm:$0xff]
    %v388 = vld [vmem:[#allocation2 + $0x1d8] sm:$0xff]
    %v389 = vld [vmem:[#allocation2 + $0x1e0] sm:$0xff]
    %v390 = vld [vmem:[#allocation2 + $0x1e8] sm:$0xff]
    %v391 = vld [vmem:[#allocation2 + $0x1f0] sm:$0xff]
    %v392 = vld [vmem:[#allocation2 + $0x1f8] sm:$0xff]
    %v393 = vld [vmem:[#allocation2 + $0x200] sm:$0xff]
    %v394 = vld [vmem:[#allocation2 + $0x208] sm:$0xff]
    %v395 = vld [vmem:[#allocation2 + $0x210] sm:$0xff]
    %v396 = vld [vmem:[#allocation2 + $0x218] sm:$0xff]
    %v397 = vld [vmem:[#allocation2 + $0x220] sm:$0xff]
    %v398 = vld [vmem:[#allocation2 + $0x228] sm:$0xff]
    %v399 = vld [vmem:[#allocation2 + $0x230] sm:$0xff]
    %v400 = vld [vmem:[#allocation2 + $0x238] sm:$0xff]
    %v401 = vld [vmem:[#allocation2 + $0x240] sm:$0xff]
    %v402 = vld [vmem:[#allocation2 + $0x248] sm:$0xff]
    %v403 = vld [vmem:[#allocation2 + $0x250] sm:$0xff]
    %v404 = vld [vmem:[#allocation2 + $0x258] sm:$0xff]
    %v405 = vld [vmem:[#allocation2 + $0x260] sm:$0xff]
    %v406 = vld [vmem:[#allocation2 + $0x268] sm:$0xff]
    %v407 = vld [vmem:[#allocation2 + $0x270] sm:$0xff]
    %v408 = vld [vmem:[#allocation2 + $0x278] sm:$0xff]
    %v409 = vld [vmem:[#allocation2 + $0x280] sm:$0xff]
    %v410 = vld [vmem:[#allocation2 + $0x288] sm:$0xff]
    %v411 = vld [vmem:[#allocation2 + $0x290] sm:$0xff]
    %v412 = vld [vmem:[#allocation2 + $0x298] sm:$0xff]
    %v413 = vld [vmem:[#allocation2 + $0x2a0] sm:$0xff]
    %v414 = vld [vmem:[#allocation2 + $0x2a8] sm:$0xff]
    %v415 = vld [vmem:[#allocation2 + $0x2b0] sm:$0xff]
    %v416 = vld [vmem:[#allocation2 + $0x2b8] sm:$0xff]
    %v417 = vld [vmem:[#allocation2 + $0x2c0] sm:$0xff]
    %v418 = vld [vmem:[#allocation2 + $0x2c8] sm:$0xff]
    %v419 = vld [vmem:[#allocation2 + $0x2d0] sm:$0xff]
    %v420 = vld [vmem:[#allocation2 + $0x2d8] sm:$0xff]
    %v421 = vld [vmem:[#allocation2 + $0x2e0] sm:$0xff]
    %v422 = vld [vmem:[#allocation2 + $0x2e8] sm:$0xff]
    %v423 = vld [vmem:[#allocation2 + $0x2f0] sm:$0xff]
    %v424 = vld [vmem:[#allocation2 + $0x2f8] sm:$0xff]
    %v425 = vld [vmem:[#allocation2 + $0x300] sm:$0xff]
    %v426 = vld [vmem:[#allocation2 + $0x308] sm:$0xff]
    %v427 = vld [vmem:[#allocation2 + $0x310] sm:$0xff]
    %v428 = vld [vmem:[#allocation2 + $0x318] sm:$0xff]
    %v429 = vld [vmem:[#allocation2 + $0x320] sm:$0xff]
    %v430 = vld [vmem:[#allocation2 + $0x328] sm:$0xff]
    %v431 = vld [vmem:[#allocation2 + $0x330] sm:$0xff]
    %v432 = vld [vmem:[#allocation2 + $0x338] sm:$0xff]
    %v433 = vld [vmem:[#allocation2 + $0x340] sm:$0xff]
    %v434 = vld [vmem:[#allocation2 + $0x348] sm:$0xff]
    %v435 = vld [vmem:[#allocation2 + $0x350] sm:$0xff]
    %v436 = vld [vmem:[#allocation2 + $0x358] sm:$0xff]
    %v437 = vld [vmem:[#allocation2 + $0x360] sm:$0xff]
    %v438 = vld [vmem:[#allocation2 + $0x368] sm:$0xff]
    %v439 = vld [vmem:[#allocation2 + $0x370] sm:$0xff]
    %v440 = vld [vmem:[#allocation2 + $0x378] sm:$0xff]
    %v441 = vld [vmem:[#allocation2 + $0x380] sm:$0xff]
    %v442 = vld [vmem:[#allocation2 + $0x388] sm:$0xff]
    %v443 = vld [vmem:[#allocation2 + $0x390] sm:$0xff]
    %v444 = vld [vmem:[#allocation2 + $0x398] sm:$0xff]
    %v445 = vld [vmem:[#allocation2 + $0x3a0] sm:$0xff]
    %v446 = vld [vmem:[#allocation2 + $0x3a8] sm:$0xff]
    %v447 = vld [vmem:[#allocation2 + $0x3b0] sm:$0xff]
    %v448 = vld [vmem:[#allocation2 + $0x3b8] sm:$0xff]
    %v449 = vld [vmem:[#allocation2 + $0x3c0] sm:$0xff]
    %v450 = vld [vmem:[#allocation2 + $0x3c8] sm:$0xff]
    %v451 = vld [vmem:[#allocation2 + $0x3d0] sm:$0xff]
    %v452 = vld [vmem:[#allocation2 + $0x3d8] sm:$0xff]
    %v453 = vld [vmem:[#allocation2 + $0x3e0] sm:$0xff]
    %v454 = vld [vmem:[#allocation2 + $0x3e8] sm:$0xff]
    %v455 = vld [vmem:[#allocation2 + $0x3f0] sm:$0xff]
    %v456 = vld [vmem:[#allocation2 + $0x3f8] sm:$0xff]
    %v457 = vld [vmem:[#allocation2 + $0x400] sm:$0xff]
    %v458 = vld [vmem:[#allocation2 + $0x408] sm:$0xff]
    %v459 = vld [vmem:[#allocation2 + $0x410] sm:$0xff]
    %v460 = vld [vmem:[#allocation2 + $0x418] sm:$0xff]
    %v461 = vld [vmem:[#allocation2 + $0x420] sm:$0xff]
    %v462 = vld [vmem:[#allocation2 + $0x428] sm:$0xff]
    %v463 = vld [vmem:[#allocation2 + $0x430] sm:$0xff]
    %v464 = vld [vmem:[#allocation2 + $0x438] sm:$0xff]
    %v465 = vld [vmem:[#allocation2 + $0x440] sm:$0xff]
    %v466 = vld [vmem:[#allocation2 + $0x448] sm:$0xff]
    %v467 = vld [vmem:[#allocation2 + $0x450] sm:$0xff]
    %v468 = vld [vmem:[#allocation2 + $0x458] sm:$0xff]
    %v469 = vld [vmem:[#allocation2 + $0x460] sm:$0xff]
    %v470 = vld [vmem:[#allocation2 + $0x468] sm:$0xff]
    %v471 = vld [vmem:[#allocation2 + $0x470] sm:$0xff]
    %v472 = vld [vmem:[#allocation2 + $0x478] sm:$0xff]
    %v473 = vld [vmem:[#allocation2 + $0x480] sm:$0xff]
    %v474 = vld [vmem:[#allocation2 + $0x488] sm:$0xff]
    %v475 = vld [vmem:[#allocation2 + $0x490] sm:$0xff]
    %v476 = vld [vmem:[#allocation2 + $0x498] sm:$0xff]
    %v477 = vld [vmem:[#allocation2 + $0x4a0] sm:$0xff]
    %v478 = vld [vmem:[#allocation2 + $0x4a8] sm:$0xff]
    %v479 = vld [vmem:[#allocation2 + $0x4b0] sm:$0xff]
    %v480 = vld [vmem:[#allocation2 + $0x4b8] sm:$0xff]
    %v481 = vld [vmem:[#allocation2 + $0x4c0] sm:$0xff]
    %v482 = vld [vmem:[#allocation2 + $0x4c8] sm:$0xff]
    %v483 = vld [vmem:[#allocation2 + $0x4d0] sm:$0xff]
    %v484 = vld [vmem:[#allocation2 + $0x4d8] sm:$0xff]
    %v485 = vld [vmem:[#allocation2 + $0x4e0] sm:$0xff]
    %v486 = vld [vmem:[#allocation2 + $0x4e8] sm:$0xff]
    %v487 = vld [vmem:[#allocation2 + $0x4f0] sm:$0xff]
    %v488 = vld [vmem:[#allocation2 + $0x4f8] sm:$0xff]
    %v489 = vld [vmem:[#allocation2 + $0x500] sm:$0xff]
    %v490 = vld [vmem:[#allocation2 + $0x508] sm:$0xff]
    %v491 = vld [vmem:[#allocation2 + $0x510] sm:$0xff]
    %v492 = vld [vmem:[#allocation2 + $0x518] sm:$0xff]
    %v493 = vld [vmem:[#allocation2 + $0x520] sm:$0xff]
    %v494 = vld [vmem:[#allocation2 + $0x528] sm:$0xff]
    %v495 = vld [vmem:[#allocation2 + $0x530] sm:$0xff]
    %v496 = vld [vmem:[#allocation2 + $0x538] sm:$0xff]
    %v497 = vld [vmem:[#allocation2 + $0x540] sm:$0xff]
    %v498 = vld [vmem:[#allocation2 + $0x548] sm:$0xff]
    %v499 = vld [vmem:[#allocation2 + $0x550] sm:$0xff]
    %v500 = vld [vmem:[#allocation2 + $0x558] sm:$0xff]
    %v501 = vld [vmem:[#allocation2 + $0x560] sm:$0xff]
    %v502 = vld [vmem:[#allocation2 + $0x568] sm:$0xff]
    %v503 = vld [vmem:[#allocation2 + $0x570] sm:$0xff]
    %v504 = vld [vmem:[#allocation2 + $0x578] sm:$0xff]
    %v505 = vld [vmem:[#allocation2 + $0x580] sm:$0xff]
    %v506 = vld [vmem:[#allocation2 + $0x588] sm:$0xff]
    %v507 = vld [vmem:[#allocation2 + $0x590] sm:$0xff]
    %v508 = vld [vmem:[#allocation2 + $0x598] sm:$0xff]
    %v509 = vld [vmem:[#allocation2 + $0x5a0] sm:$0xff]
    %v510 = vld [vmem:[#allocation2 + $0x5a8] sm:$0xff]
    %v511 = vld [vmem:[#allocation2 + $0x5b0] sm:$0xff]
    %v512 = vld [vmem:[#allocation2 + $0x5b8] sm:$0xff]
    %v513 = vld [vmem:[#allocation2 + $0x5c0] sm:$0xff]
    %v514 = vld [vmem:[#allocation2 + $0x5c8] sm:$0xff]
    %v515 = vld [vmem:[#allocation2 + $0x5d0] sm:$0xff]
    %v516 = vld [vmem:[#allocation2 + $0x5d8] sm:$0xff]
    %v517 = vld [vmem:[#allocation2 + $0x5e0] sm:$0xff]
    %v518 = vld [vmem:[#allocation2 + $0x5e8] sm:$0xff]
    %v519 = vld [vmem:[#allocation2 + $0x5f0] sm:$0xff]
    %v520 = vld [vmem:[#allocation2 + $0x5f8] sm:$0xff]
    %v521 = vld [vmem:[#allocation2 + $0x600] sm:$0xff]
    %v522 = vld [vmem:[#allocation2 + $0x608] sm:$0xff]
    %v523 = vld [vmem:[#allocation2 + $0x610] sm:$0xff]
    %v524 = vld [vmem:[#allocation2 + $0x618] sm:$0xff]
    %v525 = vld [vmem:[#allocation2 + $0x620] sm:$0xff]
    %v526 = vld [vmem:[#allocation2 + $0x628] sm:$0xff]
    %v527 = vld [vmem:[#allocation2 + $0x630] sm:$0xff]
    %v528 = vld [vmem:[#allocation2 + $0x638] sm:$0xff]
    %v529 = vld [vmem:[#allocation2 + $0x640] sm:$0xff]
    %v530 = vld [vmem:[#allocation2 + $0x648] sm:$0xff]
    %v531 = vld [vmem:[#allocation2 + $0x650] sm:$0xff]
    %v532 = vld [vmem:[#allocation2 + $0x658] sm:$0xff]
    %v533 = vld [vmem:[#allocation2 + $0x660] sm:$0xff]
    %v534 = vld [vmem:[#allocation2 + $0x668] sm:$0xff]
    %v535 = vld [vmem:[#allocation2 + $0x670] sm:$0xff]
    %v536 = vld [vmem:[#allocation2 + $0x678] sm:$0xff]
    %v537 = vld [vmem:[#allocation2 + $0x680] sm:$0xff]
    %v538 = vld [vmem:[#allocation2 + $0x688] sm:$0xff]
    %v539 = vld [vmem:[#allocation2 + $0x690] sm:$0xff]
    %v540 = vld [vmem:[#allocation2 + $0x698] sm:$0xff]
    %v541 = vld [vmem:[#allocation2 + $0x6a0] sm:$0xff]
    %v542 = vld [vmem:[#allocation2 + $0x6a8] sm:$0xff]
    %v543 = vld [vmem:[#allocation2 + $0x6b0] sm:$0xff]
    %v544 = vld [vmem:[#allocation2 + $0x6b8] sm:$0xff]
    %v545 = vld [vmem:[#allocation2 + $0x6c0] sm:$0xff]
    %v546 = vld [vmem:[#allocation2 + $0x6c8] sm:$0xff]
    %v547 = vld [vmem:[#allocation2 + $0x6d0] sm:$0xff]
    %v548 = vld [vmem:[#allocation2 + $0x6d8] sm:$0xff]
    %v549 = vld [vmem:[#allocation2 + $0x6e0] sm:$0xff]
    %v550 = vld [vmem:[#allocation2 + $0x6e8] sm:$0xff]
    %v551 = vld [vmem:[#allocation2 + $0x6f0] sm:$0xff]
    %v552 = vld [vmem:[#allocation2 + $0x6f8] sm:$0xff]
    %v553 = vld [vmem:[#allocation2 + $0x700] sm:$0xff]
    %v554 = vld [vmem:[#allocation2 + $0x708] sm:$0xff]
    %v555 = vld [vmem:[#allocation2 + $0x710] sm:$0xff]
    %v556 = vld [vmem:[#allocation2 + $0x718] sm:$0xff]
    %v557 = vld [vmem:[#allocation2 + $0x720] sm:$0xff]
    %v558 = vld [vmem:[#allocation2 + $0x728] sm:$0xff]
    %v559 = vld [vmem:[#allocation2 + $0x730] sm:$0xff]
    %v560 = vld [vmem:[#allocation2 + $0x738] sm:$0xff]
    %v561 = vld [vmem:[#allocation2 + $0x740] sm:$0xff]
    %v562 = vld [vmem:[#allocation2 + $0x748] sm:$0xff]
    %v563 = vld [vmem:[#allocation2 + $0x750] sm:$0xff]
    %v564 = vld [vmem:[#allocation2 + $0x758] sm:$0xff]
    %v565 = vld [vmem:[#allocation2 + $0x760] sm:$0xff]
    %v566 = vld [vmem:[#allocation2 + $0x768] sm:$0xff]
    %v567 = vld [vmem:[#allocation2 + $0x770] sm:$0xff]
    %v568 = vld [vmem:[#allocation2 + $0x778] sm:$0xff]
    %v569 = vld [vmem:[#allocation2 + $0x780] sm:$0xff]
    %v570 = vld [vmem:[#allocation2 + $0x788] sm:$0xff]
    %v571 = vld [vmem:[#allocation2 + $0x790] sm:$0xff]
    %v572 = vld [vmem:[#allocation2 + $0x798] sm:$0xff]
    %v573 = vld [vmem:[#allocation2 + $0x7a0] sm:$0xff]
    %v574 = vld [vmem:[#allocation2 + $0x7a8] sm:$0xff]
    %v575 = vld [vmem:[#allocation2 + $0x7b0] sm:$0xff]
    %v576 = vld [vmem:[#allocation2 + $0x7b8] sm:$0xff]
    %v577 = vld [vmem:[#allocation2 + $0x7c0] sm:$0xff]
    %v578 = vld [vmem:[#allocation2 + $0x7c8] sm:$0xff]
    %v579 = vld [vmem:[#allocation2 + $0x7d0] sm:$0xff]
    %v580 = vld [vmem:[#allocation2 + $0x7d8] sm:$0xff]
    %v581 = vld [vmem:[#allocation2 + $0x7e0] sm:$0xff]
    %v582 = vld [vmem:[#allocation2 + $0x7e8] sm:$0xff]
    %v583 = vld [vmem:[#allocation2 + $0x7f0] sm:$0xff]
    %v584 = vld [vmem:[#allocation2 + $0x7f8] sm:$0xff]
    %v585 = vld [vmem:[%s4] sm:$0xf]
    %v587 = vlaneseq
    %v588 = vshrl.u32 %v587, 7
    %v589 = vsub.s32 0, %v588
    %v590 = vrot.slane %v585, %v589
    %v591 = vlaneseq
    %v592 = vshrl.u32 %v591, 7
    %v593 = vsub.s32 1, %v592
    %v594 = vrot.slane %v585, %v593
    %v595 = vlaneseq
    %v596 = vshrl.u32 %v595, 7
    %v597 = vsub.s32 2, %v596
    %v598 = vrot.slane %v585, %v597
    %v599 = vlaneseq
    %v600 = vshrl.u32 %v599, 7
    %v601 = vsub.s32 3, %v600
    %v602 = vrot.slane %v585, %v601
    %v863 = vunpack.c.l.b16 %v329
    %v864 = vunpack.c.h.b16 %v329
    %v865 = vunpack.c.l.b16 %v330
    %v866 = vunpack.c.h.b16 %v330
    %v867 = vunpack.c.l.b16 %v331
    %v868 = vunpack.c.h.b16 %v331
    %v869 = vunpack.c.l.b16 %v332
    %v870 = vunpack.c.h.b16 %v332
    %v871 = vunpack.c.l.b16 %v333
    %v872 = vunpack.c.h.b16 %v333
    %v873 = vunpack.c.l.b16 %v334
    %v874 = vunpack.c.h.b16 %v334
    %v875 = vunpack.c.l.b16 %v335
    %v876 = vunpack.c.h.b16 %v335
    %v877 = vunpack.c.l.b16 %v336
    %v878 = vunpack.c.h.b16 %v336
    %v879 = vunpack.c.l.b16 %v337
    %v880 = vunpack.c.h.b16 %v337
    %v881 = vunpack.c.l.b16 %v338
    %v882 = vunpack.c.h.b16 %v338
    %v883 = vunpack.c.l.b16 %v339
    %v884 = vunpack.c.h.b16 %v339
    %v885 = vunpack.c.l.b16 %v340
    %v886 = vunpack.c.h.b16 %v340
    %v887 = vunpack.c.l.b16 %v341
    %v888 = vunpack.c.h.b16 %v341
    %v889 = vunpack.c.l.b16 %v342
    %v890 = vunpack.c.h.b16 %v342
    %v891 = vunpack.c.l.b16 %v343
    %v892 = vunpack.c.h.b16 %v343
    %v893 = vunpack.c.l.b16 %v344
    %v894 = vunpack.c.h.b16 %v344
    %v895 = vunpack.c.l.b16 %v345
    %v896 = vunpack.c.h.b16 %v345
    %v897 = vunpack.c.l.b16 %v346
    %v898 = vunpack.c.h.b16 %v346
    %v899 = vunpack.c.l.b16 %v347
    %v900 = vunpack.c.h.b16 %v347
    %v901 = vunpack.c.l.b16 %v348
    %v902 = vunpack.c.h.b16 %v348
    %v903 = vunpack.c.l.b16 %v349
    %v904 = vunpack.c.h.b16 %v349
    %v905 = vunpack.c.l.b16 %v350
    %v906 = vunpack.c.h.b16 %v350
    %v907 = vunpack.c.l.b16 %v351
    %v908 = vunpack.c.h.b16 %v351
    %v909 = vunpack.c.l.b16 %v352
    %v910 = vunpack.c.h.b16 %v352
    %v911 = vunpack.c.l.b16 %v353
    %v912 = vunpack.c.h.b16 %v353
    %v913 = vunpack.c.l.b16 %v354
    %v914 = vunpack.c.h.b16 %v354
    %v915 = vunpack.c.l.b16 %v355
    %v916 = vunpack.c.h.b16 %v355
    %v917 = vunpack.c.l.b16 %v356
    %v918 = vunpack.c.h.b16 %v356
    %v919 = vunpack.c.l.b16 %v357
    %v920 = vunpack.c.h.b16 %v357
    %v921 = vunpack.c.l.b16 %v358
    %v922 = vunpack.c.h.b16 %v358
    %v923 = vunpack.c.l.b16 %v359
    %v924 = vunpack.c.h.b16 %v359
    %v925 = vunpack.c.l.b16 %v360
    %v926 = vunpack.c.h.b16 %v360
    %v927 = vunpack.c.l.b16 %v361
    %v928 = vunpack.c.h.b16 %v361
    %v929 = vunpack.c.l.b16 %v362
    %v930 = vunpack.c.h.b16 %v362
    %v931 = vunpack.c.l.b16 %v363
    %v932 = vunpack.c.h.b16 %v363
    %v933 = vunpack.c.l.b16 %v364
    %v934 = vunpack.c.h.b16 %v364
    %v935 = vunpack.c.l.b16 %v365
    %v936 = vunpack.c.h.b16 %v365
    %v937 = vunpack.c.l.b16 %v366
    %v938 = vunpack.c.h.b16 %v366
    %v939 = vunpack.c.l.b16 %v367
    %v940 = vunpack.c.h.b16 %v367
    %v941 = vunpack.c.l.b16 %v368
    %v942 = vunpack.c.h.b16 %v368
    %v943 = vunpack.c.l.b16 %v369
    %v944 = vunpack.c.h.b16 %v369
    %v945 = vunpack.c.l.b16 %v370
    %v946 = vunpack.c.h.b16 %v370
    %v947 = vunpack.c.l.b16 %v371
    %v948 = vunpack.c.h.b16 %v371
    %v949 = vunpack.c.l.b16 %v372
    %v950 = vunpack.c.h.b16 %v372
    %v951 = vunpack.c.l.b16 %v373
    %v952 = vunpack.c.h.b16 %v373
    %v953 = vunpack.c.l.b16 %v374
    %v954 = vunpack.c.h.b16 %v374
    %v955 = vunpack.c.l.b16 %v375
    %v956 = vunpack.c.h.b16 %v375
    %v957 = vunpack.c.l.b16 %v376
    %v958 = vunpack.c.h.b16 %v376
    %v959 = vunpack.c.l.b16 %v377
    %v960 = vunpack.c.h.b16 %v377
    %v961 = vunpack.c.l.b16 %v378
    %v962 = vunpack.c.h.b16 %v378
    %v963 = vunpack.c.l.b16 %v379
    %v964 = vunpack.c.h.b16 %v379
    %v965 = vunpack.c.l.b16 %v380
    %v966 = vunpack.c.h.b16 %v380
    %v967 = vunpack.c.l.b16 %v381
    %v968 = vunpack.c.h.b16 %v381
    %v969 = vunpack.c.l.b16 %v382
    %v970 = vunpack.c.h.b16 %v382
    %v971 = vunpack.c.l.b16 %v383
    %v972 = vunpack.c.h.b16 %v383
    %v973 = vunpack.c.l.b16 %v384
    %v974 = vunpack.c.h.b16 %v384
    %v975 = vunpack.c.l.b16 %v385
    %v976 = vunpack.c.h.b16 %v385
    %v977 = vunpack.c.l.b16 %v386
    %v978 = vunpack.c.h.b16 %v386
    %v979 = vunpack.c.l.b16 %v387
    %v980 = vunpack.c.h.b16 %v387
    %v981 = vunpack.c.l.b16 %v388
    %v982 = vunpack.c.h.b16 %v388
    %v983 = vunpack.c.l.b16 %v389
    %v984 = vunpack.c.h.b16 %v389
    %v985 = vunpack.c.l.b16 %v390
    %v986 = vunpack.c.h.b16 %v390
    %v987 = vunpack.c.l.b16 %v391
    %v988 = vunpack.c.h.b16 %v391
    %v989 = vunpack.c.l.b16 %v392
    %v990 = vunpack.c.h.b16 %v392
    %v991 = vunpack.c.l.b16 %v393
    %v992 = vunpack.c.h.b16 %v393
    %v993 = vunpack.c.l.b16 %v394
    %v994 = vunpack.c.h.b16 %v394
    %v995 = vunpack.c.l.b16 %v395
    %v996 = vunpack.c.h.b16 %v395
    %v997 = vunpack.c.l.b16 %v396
    %v998 = vunpack.c.h.b16 %v396
    %v999 = vunpack.c.l.b16 %v397
    %v1000 = vunpack.c.h.b16 %v397
    %v1001 = vunpack.c.l.b16 %v398
    %v1002 = vunpack.c.h.b16 %v398
    %v1003 = vunpack.c.l.b16 %v399
    %v1004 = vunpack.c.h.b16 %v399
    %v1005 = vunpack.c.l.b16 %v400
    %v1006 = vunpack.c.h.b16 %v400
    %v1007 = vunpack.c.l.b16 %v401
    %v1008 = vunpack.c.h.b16 %v401
    %v1009 = vunpack.c.l.b16 %v402
    %v1010 = vunpack.c.h.b16 %v402
    %v1011 = vunpack.c.l.b16 %v403
    %v1012 = vunpack.c.h.b16 %v403
    %v1013 = vunpack.c.l.b16 %v404
    %v1014 = vunpack.c.h.b16 %v404
    %v1015 = vunpack.c.l.b16 %v405
    %v1016 = vunpack.c.h.b16 %v405
    %v1017 = vunpack.c.l.b16 %v406
    %v1018 = vunpack.c.h.b16 %v406
    %v1019 = vunpack.c.l.b16 %v407
    %v1020 = vunpack.c.h.b16 %v407
    %v1021 = vunpack.c.l.b16 %v408
    %v1022 = vunpack.c.h.b16 %v408
    %v1023 = vunpack.c.l.b16 %v409
    %v1024 = vunpack.c.h.b16 %v409
    %v1025 = vunpack.c.l.b16 %v410
    %v1026 = vunpack.c.h.b16 %v410
    %v1027 = vunpack.c.l.b16 %v411
    %v1028 = vunpack.c.h.b16 %v411
    %v1029 = vunpack.c.l.b16 %v412
    %v1030 = vunpack.c.h.b16 %v412
    %v1031 = vunpack.c.l.b16 %v413
    %v1032 = vunpack.c.h.b16 %v413
    %v1033 = vunpack.c.l.b16 %v414
    %v1034 = vunpack.c.h.b16 %v414
    %v1035 = vunpack.c.l.b16 %v415
    %v1036 = vunpack.c.h.b16 %v415
    %v1037 = vunpack.c.l.b16 %v416
    %v1038 = vunpack.c.h.b16 %v416
    %v1039 = vunpack.c.l.b16 %v417
    %v1040 = vunpack.c.h.b16 %v417
    %v1041 = vunpack.c.l.b16 %v418
    %v1042 = vunpack.c.h.b16 %v418
    %v1043 = vunpack.c.l.b16 %v419
    %v1044 = vunpack.c.h.b16 %v419
    %v1045 = vunpack.c.l.b16 %v420
    %v1046 = vunpack.c.h.b16 %v420
    %v1047 = vunpack.c.l.b16 %v421
    %v1048 = vunpack.c.h.b16 %v421
    %v1049 = vunpack.c.l.b16 %v422
    %v1050 = vunpack.c.h.b16 %v422
    %v1051 = vunpack.c.l.b16 %v423
    %v1052 = vunpack.c.h.b16 %v423
    %v1053 = vunpack.c.l.b16 %v424
    %v1054 = vunpack.c.h.b16 %v424
    %v1055 = vunpack.c.l.b16 %v425
    %v1056 = vunpack.c.h.b16 %v425
    %v1057 = vunpack.c.l.b16 %v426
    %v1058 = vunpack.c.h.b16 %v426
    %v1059 = vunpack.c.l.b16 %v427
    %v1060 = vunpack.c.h.b16 %v427
    %v1061 = vunpack.c.l.b16 %v428
    %v1062 = vunpack.c.h.b16 %v428
    %v1063 = vunpack.c.l.b16 %v429
    %v1064 = vunpack.c.h.b16 %v429
    %v1065 = vunpack.c.l.b16 %v430
    %v1066 = vunpack.c.h.b16 %v430
    %v1067 = vunpack.c.l.b16 %v431
    %v1068 = vunpack.c.h.b16 %v431
    %v1069 = vunpack.c.l.b16 %v432
    %v1070 = vunpack.c.h.b16 %v432
    %v1071 = vunpack.c.l.b16 %v433
    %v1072 = vunpack.c.h.b16 %v433
    %v1073 = vunpack.c.l.b16 %v434
    %v1074 = vunpack.c.h.b16 %v434
    %v1075 = vunpack.c.l.b16 %v435
    %v1076 = vunpack.c.h.b16 %v435
    %v1077 = vunpack.c.l.b16 %v436
    %v1078 = vunpack.c.h.b16 %v436
    %v1079 = vunpack.c.l.b16 %v437
    %v1080 = vunpack.c.h.b16 %v437
    %v1081 = vunpack.c.l.b16 %v438
    %v1082 = vunpack.c.h.b16 %v438
    %v1083 = vunpack.c.l.b16 %v439
    %v1084 = vunpack.c.h.b16 %v439
    %v1085 = vunpack.c.l.b16 %v440
    %v1086 = vunpack.c.h.b16 %v440
    %v1087 = vunpack.c.l.b16 %v441
    %v1088 = vunpack.c.h.b16 %v441
    %v1089 = vunpack.c.l.b16 %v442
    %v1090 = vunpack.c.h.b16 %v442
    %v1091 = vunpack.c.l.b16 %v443
    %v1092 = vunpack.c.h.b16 %v443
    %v1093 = vunpack.c.l.b16 %v444
    %v1094 = vunpack.c.h.b16 %v444
    %v1095 = vunpack.c.l.b16 %v445
    %v1096 = vunpack.c.h.b16 %v445
    %v1097 = vunpack.c.l.b16 %v446
    %v1098 = vunpack.c.h.b16 %v446
    %v1099 = vunpack.c.l.b16 %v447
    %v1100 = vunpack.c.h.b16 %v447
    %v1101 = vunpack.c.l.b16 %v448
    %v1102 = vunpack.c.h.b16 %v448
    %v1103 = vunpack.c.l.b16 %v449
    %v1104 = vunpack.c.h.b16 %v449
    %v1105 = vunpack.c.l.b16 %v450
    %v1106 = vunpack.c.h.b16 %v450
    %v1107 = vunpack.c.l.b16 %v451
    %v1108 = vunpack.c.h.b16 %v451
    %v1109 = vunpack.c.l.b16 %v452
    %v1110 = vunpack.c.h.b16 %v452
    %v1111 = vunpack.c.l.b16 %v453
    %v1112 = vunpack.c.h.b16 %v453
    %v1113 = vunpack.c.l.b16 %v454
    %v1114 = vunpack.c.h.b16 %v454
    %v1115 = vunpack.c.l.b16 %v455
    %v1116 = vunpack.c.h.b16 %v455
    %v1117 = vunpack.c.l.b16 %v456
    %v1118 = vunpack.c.h.b16 %v456
    %v1119 = vunpack.c.l.b16 %v457
    %v1120 = vunpack.c.h.b16 %v457
    %v1121 = vunpack.c.l.b16 %v458
    %v1122 = vunpack.c.h.b16 %v458
    %v1123 = vunpack.c.l.b16 %v459
    %v1124 = vunpack.c.h.b16 %v459
    %v1125 = vunpack.c.l.b16 %v460
    %v1126 = vunpack.c.h.b16 %v460
    %v1127 = vunpack.c.l.b16 %v461
    %v1128 = vunpack.c.h.b16 %v461
    %v1129 = vunpack.c.l.b16 %v462
    %v1130 = vunpack.c.h.b16 %v462
    %v1131 = vunpack.c.l.b16 %v463
    %v1132 = vunpack.c.h.b16 %v463
    %v1133 = vunpack.c.l.b16 %v464
    %v1134 = vunpack.c.h.b16 %v464
    %v1135 = vunpack.c.l.b16 %v465
    %v1136 = vunpack.c.h.b16 %v465
    %v1137 = vunpack.c.l.b16 %v466
    %v1138 = vunpack.c.h.b16 %v466
    %v1139 = vunpack.c.l.b16 %v467
    %v1140 = vunpack.c.h.b16 %v467
    %v1141 = vunpack.c.l.b16 %v468
    %v1142 = vunpack.c.h.b16 %v468
    %v1143 = vunpack.c.l.b16 %v469
    %v1144 = vunpack.c.h.b16 %v469
    %v1145 = vunpack.c.l.b16 %v470
    %v1146 = vunpack.c.h.b16 %v470
    %v1147 = vunpack.c.l.b16 %v471
    %v1148 = vunpack.c.h.b16 %v471
    %v1149 = vunpack.c.l.b16 %v472
    %v1150 = vunpack.c.h.b16 %v472
    %v1151 = vunpack.c.l.b16 %v473
    %v1152 = vunpack.c.h.b16 %v473
    %v1153 = vunpack.c.l.b16 %v474
    %v1154 = vunpack.c.h.b16 %v474
    %v1155 = vunpack.c.l.b16 %v475
    %v1156 = vunpack.c.h.b16 %v475
    %v1157 = vunpack.c.l.b16 %v476
    %v1158 = vunpack.c.h.b16 %v476
    %v1159 = vunpack.c.l.b16 %v477
    %v1160 = vunpack.c.h.b16 %v477
    %v1161 = vunpack.c.l.b16 %v478
    %v1162 = vunpack.c.h.b16 %v478
    %v1163 = vunpack.c.l.b16 %v479
    %v1164 = vunpack.c.h.b16 %v479
    %v1165 = vunpack.c.l.b16 %v480
    %v1166 = vunpack.c.h.b16 %v480
    %v1167 = vunpack.c.l.b16 %v481
    %v1168 = vunpack.c.h.b16 %v481
    %v1169 = vunpack.c.l.b16 %v482
    %v1170 = vunpack.c.h.b16 %v482
    %v1171 = vunpack.c.l.b16 %v483
    %v1172 = vunpack.c.h.b16 %v483
    %v1173 = vunpack.c.l.b16 %v484
    %v1174 = vunpack.c.h.b16 %v484
    %v1175 = vunpack.c.l.b16 %v485
    %v1176 = vunpack.c.h.b16 %v485
    %v1177 = vunpack.c.l.b16 %v486
    %v1178 = vunpack.c.h.b16 %v486
    %v1179 = vunpack.c.l.b16 %v487
    %v1180 = vunpack.c.h.b16 %v487
    %v1181 = vunpack.c.l.b16 %v488
    %v1182 = vunpack.c.h.b16 %v488
    %v1183 = vunpack.c.l.b16 %v489
    %v1184 = vunpack.c.h.b16 %v489
    %v1185 = vunpack.c.l.b16 %v490
    %v1186 = vunpack.c.h.b16 %v490
    %v1187 = vunpack.c.l.b16 %v491
    %v1188 = vunpack.c.h.b16 %v491
    %v1189 = vunpack.c.l.b16 %v492
    %v1190 = vunpack.c.h.b16 %v492
    %v1191 = vunpack.c.l.b16 %v493
    %v1192 = vunpack.c.h.b16 %v493
    %v1193 = vunpack.c.l.b16 %v494
    %v1194 = vunpack.c.h.b16 %v494
    %v1195 = vunpack.c.l.b16 %v495
    %v1196 = vunpack.c.h.b16 %v495
    %v1197 = vunpack.c.l.b16 %v496
    %v1198 = vunpack.c.h.b16 %v496
    %v1199 = vunpack.c.l.b16 %v497
    %v1200 = vunpack.c.h.b16 %v497
    %v1201 = vunpack.c.l.b16 %v498
    %v1202 = vunpack.c.h.b16 %v498
    %v1203 = vunpack.c.l.b16 %v499
    %v1204 = vunpack.c.h.b16 %v499
    %v1205 = vunpack.c.l.b16 %v500
    %v1206 = vunpack.c.h.b16 %v500
    %v1207 = vunpack.c.l.b16 %v501
    %v1208 = vunpack.c.h.b16 %v501
    %v1209 = vunpack.c.l.b16 %v502
    %v1210 = vunpack.c.h.b16 %v502
    %v1211 = vunpack.c.l.b16 %v503
    %v1212 = vunpack.c.h.b16 %v503
    %v1213 = vunpack.c.l.b16 %v504
    %v1214 = vunpack.c.h.b16 %v504
    %v1215 = vunpack.c.l.b16 %v505
    %v1216 = vunpack.c.h.b16 %v505
    %v1217 = vunpack.c.l.b16 %v506
    %v1218 = vunpack.c.h.b16 %v506
    %v1219 = vunpack.c.l.b16 %v507
    %v1220 = vunpack.c.h.b16 %v507
    %v1221 = vunpack.c.l.b16 %v508
    %v1222 = vunpack.c.h.b16 %v508
    %v1223 = vunpack.c.l.b16 %v509
    %v1224 = vunpack.c.h.b16 %v509
    %v1225 = vunpack.c.l.b16 %v510
    %v1226 = vunpack.c.h.b16 %v510
    %v1227 = vunpack.c.l.b16 %v511
    %v1228 = vunpack.c.h.b16 %v511
    %v1229 = vunpack.c.l.b16 %v512
    %v1230 = vunpack.c.h.b16 %v512
    %v1231 = vunpack.c.l.b16 %v513
    %v1232 = vunpack.c.h.b16 %v513
    %v1233 = vunpack.c.l.b16 %v514
    %v1234 = vunpack.c.h.b16 %v514
    %v1235 = vunpack.c.l.b16 %v515
    %v1236 = vunpack.c.h.b16 %v515
    %v1237 = vunpack.c.l.b16 %v516
    %v1238 = vunpack.c.h.b16 %v516
    %v1239 = vunpack.c.l.b16 %v517
    %v1240 = vunpack.c.h.b16 %v517
    %v1241 = vunpack.c.l.b16 %v518
    %v1242 = vunpack.c.h.b16 %v518
    %v1243 = vunpack.c.l.b16 %v519
    %v1244 = vunpack.c.h.b16 %v519
    %v1245 = vunpack.c.l.b16 %v520
    %v1246 = vunpack.c.h.b16 %v520
    %v1247 = vunpack.c.l.b16 %v521
    %v1248 = vunpack.c.h.b16 %v521
    %v1249 = vunpack.c.l.b16 %v522
    %v1250 = vunpack.c.h.b16 %v522
    %v1251 = vunpack.c.l.b16 %v523
    %v1252 = vunpack.c.h.b16 %v523
    %v1253 = vunpack.c.l.b16 %v524
    %v1254 = vunpack.c.h.b16 %v524
    %v1255 = vunpack.c.l.b16 %v525
    %v1256 = vunpack.c.h.b16 %v525
    %v1257 = vunpack.c.l.b16 %v526
    %v1258 = vunpack.c.h.b16 %v526
    %v1259 = vunpack.c.l.b16 %v527
    %v1260 = vunpack.c.h.b16 %v527
    %v1261 = vunpack.c.l.b16 %v528
    %v1262 = vunpack.c.h.b16 %v528
    %v1263 = vunpack.c.l.b16 %v529
    %v1264 = vunpack.c.h.b16 %v529
    %v1265 = vunpack.c.l.b16 %v530
    %v1266 = vunpack.c.h.b16 %v530
    %v1267 = vunpack.c.l.b16 %v531
    %v1268 = vunpack.c.h.b16 %v531
    %v1269 = vunpack.c.l.b16 %v532
    %v1270 = vunpack.c.h.b16 %v532
    %v1271 = vunpack.c.l.b16 %v533
    %v1272 = vunpack.c.h.b16 %v533
    %v1273 = vunpack.c.l.b16 %v534
    %v1274 = vunpack.c.h.b16 %v534
    %v1275 = vunpack.c.l.b16 %v535
    %v1276 = vunpack.c.h.b16 %v535
    %v1277 = vunpack.c.l.b16 %v536
    %v1278 = vunpack.c.h.b16 %v536
    %v1279 = vunpack.c.l.b16 %v537
    %v1280 = vunpack.c.h.b16 %v537
    %v1281 = vunpack.c.l.b16 %v538
    %v1282 = vunpack.c.h.b16 %v538
    %v1283 = vunpack.c.l.b16 %v539
    %v1284 = vunpack.c.h.b16 %v539
    %v1285 = vunpack.c.l.b16 %v540
    %v1286 = vunpack.c.h.b16 %v540
    %v1287 = vunpack.c.l.b16 %v541
    %v1288 = vunpack.c.h.b16 %v541
    %v1289 = vunpack.c.l.b16 %v542
    %v1290 = vunpack.c.h.b16 %v542
    %v1291 = vunpack.c.l.b16 %v543
    %v1292 = vunpack.c.h.b16 %v543
    %v1293 = vunpack.c.l.b16 %v544
    %v1294 = vunpack.c.h.b16 %v544
    %v1295 = vunpack.c.l.b16 %v545
    %v1296 = vunpack.c.h.b16 %v545
    %v1297 = vunpack.c.l.b16 %v546
    %v1298 = vunpack.c.h.b16 %v546
    %v1299 = vunpack.c.l.b16 %v547
    %v1300 = vunpack.c.h.b16 %v547
    %v1301 = vunpack.c.l.b16 %v548
    %v1302 = vunpack.c.h.b16 %v548
    %v1303 = vunpack.c.l.b16 %v549
    %v1304 = vunpack.c.h.b16 %v549
    %v1305 = vunpack.c.l.b16 %v550
    %v1306 = vunpack.c.h.b16 %v550
    %v1307 = vunpack.c.l.b16 %v551
    %v1308 = vunpack.c.h.b16 %v551
    %v1309 = vunpack.c.l.b16 %v552
    %v1310 = vunpack.c.h.b16 %v552
    %v1311 = vunpack.c.l.b16 %v553
    %v1312 = vunpack.c.h.b16 %v553
    %v1313 = vunpack.c.l.b16 %v554
    %v1314 = vunpack.c.h.b16 %v554
    %v1315 = vunpack.c.l.b16 %v555
    %v1316 = vunpack.c.h.b16 %v555
    %v1317 = vunpack.c.l.b16 %v556
    %v1318 = vunpack.c.h.b16 %v556
    %v1319 = vunpack.c.l.b16 %v557
    %v1320 = vunpack.c.h.b16 %v557
    %v1321 = vunpack.c.l.b16 %v558
    %v1322 = vunpack.c.h.b16 %v558
    %v1323 = vunpack.c.l.b16 %v559
    %v1324 = vunpack.c.h.b16 %v559
    %v1325 = vunpack.c.l.b16 %v560
    %v1326 = vunpack.c.h.b16 %v560
    %v1327 = vunpack.c.l.b16 %v561
    %v1328 = vunpack.c.h.b16 %v561
    %v1329 = vunpack.c.l.b16 %v562
    %v1330 = vunpack.c.h.b16 %v562
    %v1331 = vunpack.c.l.b16 %v563
    %v1332 = vunpack.c.h.b16 %v563
    %v1333 = vunpack.c.l.b16 %v564
    %v1334 = vunpack.c.h.b16 %v564
    %v1335 = vunpack.c.l.b16 %v565
    %v1336 = vunpack.c.h.b16 %v565
    %v1337 = vunpack.c.l.b16 %v566
    %v1338 = vunpack.c.h.b16 %v566
    %v1339 = vunpack.c.l.b16 %v567
    %v1340 = vunpack.c.h.b16 %v567
    %v1341 = vunpack.c.l.b16 %v568
    %v1342 = vunpack.c.h.b16 %v568
    %v1343 = vunpack.c.l.b16 %v569
    %v1344 = vunpack.c.h.b16 %v569
    %v1345 = vunpack.c.l.b16 %v570
    %v1346 = vunpack.c.h.b16 %v570
    %v1347 = vunpack.c.l.b16 %v571
    %v1348 = vunpack.c.h.b16 %v571
    %v1349 = vunpack.c.l.b16 %v572
    %v1350 = vunpack.c.h.b16 %v572
    %v1351 = vunpack.c.l.b16 %v573
    %v1352 = vunpack.c.h.b16 %v573
    %v1353 = vunpack.c.l.b16 %v574
    %v1354 = vunpack.c.h.b16 %v574
    %v1355 = vunpack.c.l.b16 %v575
    %v1356 = vunpack.c.h.b16 %v575
    %v1357 = vunpack.c.l.b16 %v576
    %v1358 = vunpack.c.h.b16 %v576
    %v1359 = vunpack.c.l.b16 %v577
    %v1360 = vunpack.c.h.b16 %v577
    %v1361 = vunpack.c.l.b16 %v578
    %v1362 = vunpack.c.h.b16 %v578
    %v1363 = vunpack.c.l.b16 %v579
    %v1364 = vunpack.c.h.b16 %v579
    %v1365 = vunpack.c.l.b16 %v580
    %v1366 = vunpack.c.h.b16 %v580
    %v1367 = vunpack.c.l.b16 %v581
    %v1368 = vunpack.c.h.b16 %v581
    %v1369 = vunpack.c.l.b16 %v582
    %v1370 = vunpack.c.h.b16 %v582
    %v1371 = vunpack.c.l.b16 %v583
    %v1372 = vunpack.c.h.b16 %v583
    %v1373 = vunpack.c.l.b16 %v584
    %v1374 = vunpack.c.h.b16 %v584
    %v1375 = vpack.c.b16 %v867, %v863
    %v1376 = vpack.c.b16 %v868, %v864
    %v1377 = vpack.c.b16 %v869, %v865
    %v1378 = vpack.c.b16 %v870, %v866
    %v1379 = vpack.c.b16 %v875, %v871
    %v1380 = vpack.c.b16 %v876, %v872
    %v1381 = vpack.c.b16 %v877, %v873
    %v1382 = vpack.c.b16 %v878, %v874
    %v1383 = vpack.c.b16 %v883, %v879
    %v1384 = vpack.c.b16 %v884, %v880
    %v1385 = vpack.c.b16 %v885, %v881
    %v1386 = vpack.c.b16 %v886, %v882
    %v1387 = vpack.c.b16 %v891, %v887
    %v1388 = vpack.c.b16 %v892, %v888
    %v1389 = vpack.c.b16 %v893, %v889
    %v1390 = vpack.c.b16 %v894, %v890
    %v1391 = vpack.c.b16 %v899, %v895
    %v1392 = vpack.c.b16 %v900, %v896
    %v1393 = vpack.c.b16 %v901, %v897
    %v1394 = vpack.c.b16 %v902, %v898
    %v1395 = vpack.c.b16 %v907, %v903
    %v1396 = vpack.c.b16 %v908, %v904
    %v1397 = vpack.c.b16 %v909, %v905
    %v1398 = vpack.c.b16 %v910, %v906
    %v1399 = vpack.c.b16 %v915, %v911
    %v1400 = vpack.c.b16 %v916, %v912
    %v1401 = vpack.c.b16 %v917, %v913
    %v1402 = vpack.c.b16 %v918, %v914
    %v1403 = vpack.c.b16 %v923, %v919
    %v1404 = vpack.c.b16 %v924, %v920
    %v1405 = vpack.c.b16 %v925, %v921
    %v1406 = vpack.c.b16 %v926, %v922
    %v1407 = vpack.c.b16 %v931, %v927
    %v1408 = vpack.c.b16 %v932, %v928
    %v1409 = vpack.c.b16 %v933, %v929
    %v1410 = vpack.c.b16 %v934, %v930
    %v1411 = vpack.c.b16 %v939, %v935
    %v1412 = vpack.c.b16 %v940, %v936
    %v1413 = vpack.c.b16 %v941, %v937
    %v1414 = vpack.c.b16 %v942, %v938
    %v1415 = vpack.c.b16 %v947, %v943
    %v1416 = vpack.c.b16 %v948, %v944
    %v1417 = vpack.c.b16 %v949, %v945
    %v1418 = vpack.c.b16 %v950, %v946
    %v1419 = vpack.c.b16 %v955, %v951
    %v1420 = vpack.c.b16 %v956, %v952
    %v1421 = vpack.c.b16 %v957, %v953
    %v1422 = vpack.c.b16 %v958, %v954
    %v1423 = vpack.c.b16 %v963, %v959
    %v1424 = vpack.c.b16 %v964, %v960
    %v1425 = vpack.c.b16 %v965, %v961
    %v1426 = vpack.c.b16 %v966, %v962
    %v1427 = vpack.c.b16 %v971, %v967
    %v1428 = vpack.c.b16 %v972, %v968
    %v1429 = vpack.c.b16 %v973, %v969
    %v1430 = vpack.c.b16 %v974, %v970
    %v1431 = vpack.c.b16 %v979, %v975
    %v1432 = vpack.c.b16 %v980, %v976
    %v1433 = vpack.c.b16 %v981, %v977
    %v1434 = vpack.c.b16 %v982, %v978
    %v1435 = vpack.c.b16 %v987, %v983
    %v1436 = vpack.c.b16 %v988, %v984
    %v1437 = vpack.c.b16 %v989, %v985
    %v1438 = vpack.c.b16 %v990, %v986
    %v1439 = vpack.c.b16 %v995, %v991
    %v1440 = vpack.c.b16 %v996, %v992
    %v1441 = vpack.c.b16 %v997, %v993
    %v1442 = vpack.c.b16 %v998, %v994
    %v1443 = vpack.c.b16 %v1003, %v999
    %v1444 = vpack.c.b16 %v1004, %v1000
    %v1445 = vpack.c.b16 %v1005, %v1001
    %v1446 = vpack.c.b16 %v1006, %v1002
    %v1447 = vpack.c.b16 %v1011, %v1007
    %v1448 = vpack.c.b16 %v1012, %v1008
    %v1449 = vpack.c.b16 %v1013, %v1009
    %v1450 = vpack.c.b16 %v1014, %v1010
    %v1451 = vpack.c.b16 %v1019, %v1015
    %v1452 = vpack.c.b16 %v1020, %v1016
    %v1453 = vpack.c.b16 %v1021, %v1017
    %v1454 = vpack.c.b16 %v1022, %v1018
    %v1455 = vpack.c.b16 %v1027, %v1023
    %v1456 = vpack.c.b16 %v1028, %v1024
    %v1457 = vpack.c.b16 %v1029, %v1025
    %v1458 = vpack.c.b16 %v1030, %v1026
    %v1459 = vpack.c.b16 %v1035, %v1031
    %v1460 = vpack.c.b16 %v1036, %v1032
    %v1461 = vpack.c.b16 %v1037, %v1033
    %v1462 = vpack.c.b16 %v1038, %v1034
    %v1463 = vpack.c.b16 %v1043, %v1039
    %v1464 = vpack.c.b16 %v1044, %v1040
    %v1465 = vpack.c.b16 %v1045, %v1041
    %v1466 = vpack.c.b16 %v1046, %v1042
    %v1467 = vpack.c.b16 %v1051, %v1047
    %v1468 = vpack.c.b16 %v1052, %v1048
    %v1469 = vpack.c.b16 %v1053, %v1049
    %v1470 = vpack.c.b16 %v1054, %v1050
    %v1471 = vpack.c.b16 %v1059, %v1055
    %v1472 = vpack.c.b16 %v1060, %v1056
    %v1473 = vpack.c.b16 %v1061, %v1057
    %v1474 = vpack.c.b16 %v1062, %v1058
    %v1475 = vpack.c.b16 %v1067, %v1063
    %v1476 = vpack.c.b16 %v1068, %v1064
    %v1477 = vpack.c.b16 %v1069, %v1065
    %v1478 = vpack.c.b16 %v1070, %v1066
    %v1479 = vpack.c.b16 %v1075, %v1071
    %v1480 = vpack.c.b16 %v1076, %v1072
    %v1481 = vpack.c.b16 %v1077, %v1073
    %v1482 = vpack.c.b16 %v1078, %v1074
    %v1483 = vpack.c.b16 %v1083, %v1079
    %v1484 = vpack.c.b16 %v1084, %v1080
    %v1485 = vpack.c.b16 %v1085, %v1081
    %v1486 = vpack.c.b16 %v1086, %v1082
    %v1487 = vpack.c.b16 %v1091, %v1087
    %v1488 = vpack.c.b16 %v1092, %v1088
    %v1489 = vpack.c.b16 %v1093, %v1089
    %v1490 = vpack.c.b16 %v1094, %v1090
    %v1491 = vpack.c.b16 %v1099, %v1095
    %v1492 = vpack.c.b16 %v1100, %v1096
    %v1493 = vpack.c.b16 %v1101, %v1097
    %v1494 = vpack.c.b16 %v1102, %v1098
    %v1495 = vpack.c.b16 %v1107, %v1103
    %v1496 = vpack.c.b16 %v1108, %v1104
    %v1497 = vpack.c.b16 %v1109, %v1105
    %v1498 = vpack.c.b16 %v1110, %v1106
    %v1499 = vpack.c.b16 %v1115, %v1111
    %v1500 = vpack.c.b16 %v1116, %v1112
    %v1501 = vpack.c.b16 %v1117, %v1113
    %v1502 = vpack.c.b16 %v1118, %v1114
    %v1503 = vpack.c.b16 %v1123, %v1119
    %v1504 = vpack.c.b16 %v1124, %v1120
    %v1505 = vpack.c.b16 %v1125, %v1121
    %v1506 = vpack.c.b16 %v1126, %v1122
    %v1507 = vpack.c.b16 %v1131, %v1127
    %v1508 = vpack.c.b16 %v1132, %v1128
    %v1509 = vpack.c.b16 %v1133, %v1129
    %v1510 = vpack.c.b16 %v1134, %v1130
    %v1511 = vpack.c.b16 %v1139, %v1135
    %v1512 = vpack.c.b16 %v1140, %v1136
    %v1513 = vpack.c.b16 %v1141, %v1137
    %v1514 = vpack.c.b16 %v1142, %v1138
    %v1515 = vpack.c.b16 %v1147, %v1143
    %v1516 = vpack.c.b16 %v1148, %v1144
    %v1517 = vpack.c.b16 %v1149, %v1145
    %v1518 = vpack.c.b16 %v1150, %v1146
    %v1519 = vpack.c.b16 %v1155, %v1151
    %v1520 = vpack.c.b16 %v1156, %v1152
    %v1521 = vpack.c.b16 %v1157, %v1153
    %v1522 = vpack.c.b16 %v1158, %v1154
    %v1523 = vpack.c.b16 %v1163, %v1159
    %v1524 = vpack.c.b16 %v1164, %v1160
    %v1525 = vpack.c.b16 %v1165, %v1161
    %v1526 = vpack.c.b16 %v1166, %v1162
    %v1527 = vpack.c.b16 %v1171, %v1167
    %v1528 = vpack.c.b16 %v1172, %v1168
    %v1529 = vpack.c.b16 %v1173, %v1169
    %v1530 = vpack.c.b16 %v1174, %v1170
    %v1531 = vpack.c.b16 %v1179, %v1175
    %v1532 = vpack.c.b16 %v1180, %v1176
    %v1533 = vpack.c.b16 %v1181, %v1177
    %v1534 = vpack.c.b16 %v1182, %v1178
    %v1535 = vpack.c.b16 %v1187, %v1183
    %v1536 = vpack.c.b16 %v1188, %v1184
    %v1537 = vpack.c.b16 %v1189, %v1185
    %v1538 = vpack.c.b16 %v1190, %v1186
    %v1539 = vpack.c.b16 %v1195, %v1191
    %v1540 = vpack.c.b16 %v1196, %v1192
    %v1541 = vpack.c.b16 %v1197, %v1193
    %v1542 = vpack.c.b16 %v1198, %v1194
    %v1543 = vpack.c.b16 %v1203, %v1199
    %v1544 = vpack.c.b16 %v1204, %v1200
    %v1545 = vpack.c.b16 %v1205, %v1201
    %v1546 = vpack.c.b16 %v1206, %v1202
    %v1547 = vpack.c.b16 %v1211, %v1207
    %v1548 = vpack.c.b16 %v1212, %v1208
    %v1549 = vpack.c.b16 %v1213, %v1209
    %v1550 = vpack.c.b16 %v1214, %v1210
    %v1551 = vpack.c.b16 %v1219, %v1215
    %v1552 = vpack.c.b16 %v1220, %v1216
    %v1553 = vpack.c.b16 %v1221, %v1217
    %v1554 = vpack.c.b16 %v1222, %v1218
    %v1555 = vpack.c.b16 %v1227, %v1223
    %v1556 = vpack.c.b16 %v1228, %v1224
    %v1557 = vpack.c.b16 %v1229, %v1225
    %v1558 = vpack.c.b16 %v1230, %v1226
    %v1559 = vpack.c.b16 %v1235, %v1231
    %v1560 = vpack.c.b16 %v1236, %v1232
    %v1561 = vpack.c.b16 %v1237, %v1233
    %v1562 = vpack.c.b16 %v1238, %v1234
    %v1563 = vpack.c.b16 %v1243, %v1239
    %v1564 = vpack.c.b16 %v1244, %v1240
    %v1565 = vpack.c.b16 %v1245, %v1241
    %v1566 = vpack.c.b16 %v1246, %v1242
    %v1567 = vpack.c.b16 %v1251, %v1247
    %v1568 = vpack.c.b16 %v1252, %v1248
    %v1569 = vpack.c.b16 %v1253, %v1249
    %v1570 = vpack.c.b16 %v1254, %v1250
    %v1571 = vpack.c.b16 %v1259, %v1255
    %v1572 = vpack.c.b16 %v1260, %v1256
    %v1573 = vpack.c.b16 %v1261, %v1257
    %v1574 = vpack.c.b16 %v1262, %v1258
    %v1575 = vpack.c.b16 %v1267, %v1263
    %v1576 = vpack.c.b16 %v1268, %v1264
    %v1577 = vpack.c.b16 %v1269, %v1265
    %v1578 = vpack.c.b16 %v1270, %v1266
    %v1579 = vpack.c.b16 %v1275, %v1271
    %v1580 = vpack.c.b16 %v1276, %v1272
    %v1581 = vpack.c.b16 %v1277, %v1273
    %v1582 = vpack.c.b16 %v1278, %v1274
    %v1583 = vpack.c.b16 %v1283, %v1279
    %v1584 = vpack.c.b16 %v1284, %v1280
    %v1585 = vpack.c.b16 %v1285, %v1281
    %v1586 = vpack.c.b16 %v1286, %v1282
    %v1587 = vpack.c.b16 %v1291, %v1287
    %v1588 = vpack.c.b16 %v1292, %v1288
    %v1589 = vpack.c.b16 %v1293, %v1289
    %v1590 = vpack.c.b16 %v1294, %v1290
    %v1591 = vpack.c.b16 %v1299, %v1295
    %v1592 = vpack.c.b16 %v1300, %v1296
    %v1593 = vpack.c.b16 %v1301, %v1297
    %v1594 = vpack.c.b16 %v1302, %v1298
    %v1595 = vpack.c.b16 %v1307, %v1303
    %v1596 = vpack.c.b16 %v1308, %v1304
    %v1597 = vpack.c.b16 %v1309, %v1305
    %v1598 = vpack.c.b16 %v1310, %v1306
    %v1599 = vpack.c.b16 %v1315, %v1311
    %v1600 = vpack.c.b16 %v1316, %v1312
    %v1601 = vpack.c.b16 %v1317, %v1313
    %v1602 = vpack.c.b16 %v1318, %v1314
    %v1603 = vpack.c.b16 %v1323, %v1319
    %v1604 = vpack.c.b16 %v1324, %v1320
    %v1605 = vpack.c.b16 %v1325, %v1321
    %v1606 = vpack.c.b16 %v1326, %v1322
    %v1607 = vpack.c.b16 %v1331, %v1327
    %v1608 = vpack.c.b16 %v1332, %v1328
    %v1609 = vpack.c.b16 %v1333, %v1329
    %v1610 = vpack.c.b16 %v1334, %v1330
    %v1611 = vpack.c.b16 %v1339, %v1335
    %v1612 = vpack.c.b16 %v1340, %v1336
    %v1613 = vpack.c.b16 %v1341, %v1337
    %v1614 = vpack.c.b16 %v1342, %v1338
    %v1615 = vpack.c.b16 %v1347, %v1343
    %v1616 = vpack.c.b16 %v1348, %v1344
    %v1617 = vpack.c.b16 %v1349, %v1345
    %v1618 = vpack.c.b16 %v1350, %v1346
    %v1619 = vpack.c.b16 %v1355, %v1351
    %v1620 = vpack.c.b16 %v1356, %v1352
    %v1621 = vpack.c.b16 %v1357, %v1353
    %v1622 = vpack.c.b16 %v1358, %v1354
    %v1623 = vpack.c.b16 %v1363, %v1359
    %v1624 = vpack.c.b16 %v1364, %v1360
    %v1625 = vpack.c.b16 %v1365, %v1361
    %v1626 = vpack.c.b16 %v1366, %v1362
    %v1627 = vpack.c.b16 %v1371, %v1367
    %v1628 = vpack.c.b16 %v1372, %v1368
    %v1629 = vpack.c.b16 %v1373, %v1369
    %v1630 = vpack.c.b16 %v1374, %v1370
    %1887 = vmatprep.subr.bf16.mxu0 %v1376
    %1888 = vmatpush1.bf16.msra.mxu0 %v1375
    %1889 = vmatprep.subr.bf16.mxu0 %v1380
    %1890 = vmatpush1.bf16.msra.mxu0 %v1379
    %1891 = vmatprep.subr.bf16.mxu0 %v1384
    %1892 = vmatpush1.bf16.msra.mxu0 %v1383
    %1893 = vmatprep.subr.bf16.mxu0 %v1388
    %1894 = vmatpush1.bf16.msra.mxu0 %v1387
    %1895 = vmatprep.subr.bf16.mxu0 %v1392
    %1896 = vmatpush1.bf16.msra.mxu0 %v1391
    %1897 = vmatprep.subr.bf16.mxu0 %v1396
    %1898 = vmatpush1.bf16.msra.mxu0 %v1395
    %1899 = vmatprep.subr.bf16.mxu0 %v1400
    %1900 = vmatpush1.bf16.msra.mxu0 %v1399
    %1901 = vmatprep.subr.bf16.mxu0 %v1404
    %1902 = vmatpush1.bf16.msra.mxu0 %v1403
    %1903 = vmatprep.subr.bf16.mxu0 %v1408
    %1904 = vmatpush1.bf16.msra.mxu0 %v1407
    %1905 = vmatprep.subr.bf16.mxu0 %v1412
    %1906 = vmatpush1.bf16.msra.mxu0 %v1411
    %1907 = vmatprep.subr.bf16.mxu0 %v1416
    %1908 = vmatpush1.bf16.msra.mxu0 %v1415
    %1909 = vmatprep.subr.bf16.mxu0 %v1420
    %1910 = vmatpush1.bf16.msra.mxu0 %v1419
    %1911 = vmatprep.subr.bf16.mxu0 %v1424
    %1912 = vmatpush1.bf16.msra.mxu0 %v1423
    %1913 = vmatprep.subr.bf16.mxu0 %v1428
    %1914 = vmatpush1.bf16.msra.mxu0 %v1427
    %1915 = vmatprep.subr.bf16.mxu0 %v1432
    %1916 = vmatpush1.bf16.msra.mxu0 %v1431
    %1917 = vmatprep.subr.bf16.mxu0 %v1436
    %1918 = vmatpush1.bf16.msra.mxu0 %v1435
    %1919 = vmatprep.mubr.bf16.mxu0 %v322
    %1920 = vmatmul.mubr.bf16.gmra.mrb[0].mxu0 %v321
    %v1921 = vpop.f32.mrb[0].mxu0
    %v1922 = vadd.f32 %v590, %v1921
    %v1923 = vpop.f32.mrb[0].mxu0
    %v1924 = vadd.f32 %v594, %v1923
    %v1925 = vpop.f32.mrb[0].mxu0
    %v1926 = vpop.f32.mrb[0].mxu0
    %1927 = vdwg.mxu0
    %1928 = vmatprep.subr.bf16.mxu0 %v1440
    %1929 = vmatpush1.bf16.msra.mxu0 %v1439
    %1930 = vmatprep.subr.bf16.mxu0 %v1444
    %1931 = vmatpush1.bf16.msra.mxu0 %v1443
    %1932 = vmatprep.subr.bf16.mxu0 %v1448
    %1933 = vmatpush1.bf16.msra.mxu0 %v1447
    %1934 = vmatprep.subr.bf16.mxu0 %v1452
    %1935 = vmatpush1.bf16.msra.mxu0 %v1451
    %1936 = vmatprep.subr.bf16.mxu0 %v1456
    %1937 = vmatpush1.bf16.msra.mxu0 %v1455
    %1938 = vmatprep.subr.bf16.mxu0 %v1460
    %1939 = vmatpush1.bf16.msra.mxu0 %v1459
    %1940 = vmatprep.subr.bf16.mxu0 %v1464
    %1941 = vmatpush1.bf16.msra.mxu0 %v1463
    %1942 = vmatprep.subr.bf16.mxu0 %v1468
    %1943 = vmatpush1.bf16.msra.mxu0 %v1467
    %1944 = vmatprep.subr.bf16.mxu0 %v1472
    %1945 = vmatpush1.bf16.msra.mxu0 %v1471
    %1946 = vmatprep.subr.bf16.mxu0 %v1476
    %1947 = vmatpush1.bf16.msra.mxu0 %v1475
    %1948 = vmatprep.subr.bf16.mxu0 %v1480
    %1949 = vmatpush1.bf16.msra.mxu0 %v1479
    %1950 = vmatprep.subr.bf16.mxu0 %v1484
    %1951 = vmatpush1.bf16.msra.mxu0 %v1483
    %1952 = vmatprep.subr.bf16.mxu0 %v1488
    %1953 = vmatpush1.bf16.msra.mxu0 %v1487
    %1954 = vmatprep.subr.bf16.mxu0 %v1492
    %1955 = vmatpush1.bf16.msra.mxu0 %v1491
    %1956 = vmatprep.subr.bf16.mxu0 %v1496
    %1957 = vmatpush1.bf16.msra.mxu0 %v1495
    %1958 = vmatprep.subr.bf16.mxu0 %v1500
    %1959 = vmatpush1.bf16.msra.mxu0 %v1499
    %1960 = vmatprep.mubr.bf16.mxu0 %v324
    %1961 = vmatmul.mubr.bf16.gmra.mrb[0].mxu0 %v323
    %v1962 = vpop.f32.mrb[0].mxu0
    %v1963 = vadd.f32 %v1922, %v1962
    %v1964 = vpop.f32.mrb[0].mxu0
    %v1965 = vadd.f32 %v1924, %v1964
    %v1966 = vpop.f32.mrb[0].mxu0
    %v1967 = vpop.f32.mrb[0].mxu0
    %1968 = vdwg.mxu0
    %1969 = vmatprep.subr.bf16.mxu0 %v1504
    %1970 = vmatpush1.bf16.msra.mxu0 %v1503
    %1971 = vmatprep.subr.bf16.mxu0 %v1508
    %1972 = vmatpush1.bf16.msra.mxu0 %v1507
    %1973 = vmatprep.subr.bf16.mxu0 %v1512
    %1974 = vmatpush1.bf16.msra.mxu0 %v1511
    %1975 = vmatprep.subr.bf16.mxu0 %v1516
    %1976 = vmatpush1.bf16.msra.mxu0 %v1515
    %1977 = vmatprep.subr.bf16.mxu0 %v1520
    %1978 = vmatpush1.bf16.msra.mxu0 %v1519
    %1979 = vmatprep.subr.bf16.mxu0 %v1524
    %1980 = vmatpush1.bf16.msra.mxu0 %v1523
    %1981 = vmatprep.subr.bf16.mxu0 %v1528
    %1982 = vmatpush1.bf16.msra.mxu0 %v1527
    %1983 = vmatprep.subr.bf16.mxu0 %v1532
    %1984 = vmatpush1.bf16.msra.mxu0 %v1531
    %1985 = vmatprep.subr.bf16.mxu0 %v1536
    %1986 = vmatpush1.bf16.msra.mxu0 %v1535
    %1987 = vmatprep.subr.bf16.mxu0 %v1540
    %1988 = vmatpush1.bf16.msra.mxu0 %v1539
    %1989 = vmatprep.subr.bf16.mxu0 %v1544
    %1990 = vmatpush1.bf16.msra.mxu0 %v1543
    %1991 = vmatprep.subr.bf16.mxu0 %v1548
    %1992 = vmatpush1.bf16.msra.mxu0 %v1547
    %1993 = vmatprep.subr.bf16.mxu0 %v1552
    %1994 = vmatpush1.bf16.msra.mxu0 %v1551
    %1995 = vmatprep.subr.bf16.mxu0 %v1556
    %1996 = vmatpush1.bf16.msra.mxu0 %v1555
    %1997 = vmatprep.subr.bf16.mxu0 %v1560
    %1998 = vmatpush1.bf16.msra.mxu0 %v1559
    %1999 = vmatprep.subr.bf16.mxu0 %v1564
    %2000 = vmatpush1.bf16.msra.mxu0 %v1563
    %2001 = vmatprep.mubr.bf16.mxu0 %v326
    %2002 = vmatmul.mubr.bf16.gmra.mrb[0].mxu0 %v325
    %v2003 = vpop.f32.mrb[0].mxu0
    %v2004 = vadd.f32 %v1963, %v2003
    %v2005 = vpop.f32.mrb[0].mxu0
    %v2006 = vadd.f32 %v1965, %v2005
    %v2007 = vpop.f32.mrb[0].mxu0
    %v2008 = vpop.f32.mrb[0].mxu0
    %2009 = vdwg.mxu0
    %2010 = vmatprep.subr.bf16.mxu0 %v1568
    %2011 = vmatpush1.bf16.msra.mxu0 %v1567
    %2012 = vmatprep.subr.bf16.mxu0 %v1572
    %2013 = vmatpush1.bf16.msra.mxu0 %v1571
    %2014 = vmatprep.subr.bf16.mxu0 %v1576
    %2015 = vmatpush1.bf16.msra.mxu0 %v1575
    %2016 = vmatprep.subr.bf16.mxu0 %v1580
    %2017 = vmatpush1.bf16.msra.mxu0 %v1579
    %2018 = vmatprep.subr.bf16.mxu0 %v1584
    %2019 = vmatpush1.bf16.msra.mxu0 %v1583
    %2020 = vmatprep.subr.bf16.mxu0 %v1588
    %2021 = vmatpush1.bf16.msra.mxu0 %v1587
    %2022 = vmatprep.subr.bf16.mxu0 %v1592
    %2023 = vmatpush1.bf16.msra.mxu0 %v1591
    %2024 = vmatprep.subr.bf16.mxu0 %v1596
    %2025 = vmatpush1.bf16.msra.mxu0 %v1595
    %2026 = vmatprep.subr.bf16.mxu0 %v1600
    %2027 = vmatpush1.bf16.msra.mxu0 %v1599
    %2028 = vmatprep.subr.bf16.mxu0 %v1604
    %2029 = vmatpush1.bf16.msra.mxu0 %v1603
    %2030 = vmatprep.subr.bf16.mxu0 %v1608
    %2031 = vmatpush1.bf16.msra.mxu0 %v1607
    %2032 = vmatprep.subr.bf16.mxu0 %v1612
    %2033 = vmatpush1.bf16.msra.mxu0 %v1611
    %2034 = vmatprep.subr.bf16.mxu0 %v1616
    %2035 = vmatpush1.bf16.msra.mxu0 %v1615
    %2036 = vmatprep.subr.bf16.mxu0 %v1620
    %2037 = vmatpush1.bf16.msra.mxu0 %v1619
    %2038 = vmatprep.subr.bf16.mxu0 %v1624
    %2039 = vmatpush1.bf16.msra.mxu0 %v1623
    %2040 = vmatprep.subr.bf16.mxu0 %v1628
    %2041 = vmatpush1.bf16.msra.mxu0 %v1627
    %2042 = vmatprep.mubr.bf16.mxu0 %v328
    %2043 = vmatmul.mubr.bf16.gmra.mrb[0].mxu0 %v327
    %v2044 = vpop.f32.mrb[0].mxu0
    %v2045 = vadd.f32 %v2004, %v2044
    %v2046 = vpop.f32.mrb[0].mxu0
    %v2047 = vadd.f32 %v2006, %v2046
    %v2048 = vpop.f32.mrb[0].mxu0
    %v2049 = vpop.f32.mrb[0].mxu0
    %2050 = vdwg.mxu0
    %2051 = vmatprep.subr.bf16.mxu0 %v1378
    %2052 = vmatpush1.bf16.msra.mxu0 %v1377
    %2053 = vmatprep.subr.bf16.mxu0 %v1382
    %2054 = vmatpush1.bf16.msra.mxu0 %v1381
    %2055 = vmatprep.subr.bf16.mxu0 %v1386
    %2056 = vmatpush1.bf16.msra.mxu0 %v1385
    %2057 = vmatprep.subr.bf16.mxu0 %v1390
    %2058 = vmatpush1.bf16.msra.mxu0 %v1389
    %2059 = vmatprep.subr.bf16.mxu0 %v1394
    %2060 = vmatpush1.bf16.msra.mxu0 %v1393
    %2061 = vmatprep.subr.bf16.mxu0 %v1398
    %2062 = vmatpush1.bf16.msra.mxu0 %v1397
    %2063 = vmatprep.subr.bf16.mxu0 %v1402
    %2064 = vmatpush1.bf16.msra.mxu0 %v1401
    %2065 = vmatprep.subr.bf16.mxu0 %v1406
    %2066 = vmatpush1.bf16.msra.mxu0 %v1405
    %2067 = vmatprep.subr.bf16.mxu0 %v1410
    %2068 = vmatpush1.bf16.msra.mxu0 %v1409
    %2069 = vmatprep.subr.bf16.mxu0 %v1414
    %2070 = vmatpush1.bf16.msra.mxu0 %v1413
    %2071 = vmatprep.subr.bf16.mxu0 %v1418
    %2072 = vmatpush1.bf16.msra.mxu0 %v1417
    %2073 = vmatprep.subr.bf16.mxu0 %v1422
    %2074 = vmatpush1.bf16.msra.mxu0 %v1421
    %2075 = vmatprep.subr.bf16.mxu0 %v1426
    %2076 = vmatpush1.bf16.msra.mxu0 %v1425
    %2077 = vmatprep.subr.bf16.mxu0 %v1430
    %2078 = vmatpush1.bf16.msra.mxu0 %v1429
    %2079 = vmatprep.subr.bf16.mxu0 %v1434
    %2080 = vmatpush1.bf16.msra.mxu0 %v1433
    %2081 = vmatprep.subr.bf16.mxu0 %v1438
    %2082 = vmatpush1.bf16.msra.mxu0 %v1437
    %2083 = vmatprep.mubr.bf16.mxu0 %v322
    %2084 = vmatmul.mubr.bf16.gmra.mrb[0].mxu0 %v321
    %v2085 = vpop.f32.mrb[0].mxu0
    %v2086 = vadd.f32 %v598, %v2085
    %v2087 = vpop.f32.mrb[0].mxu0
    %v2088 = vadd.f32 %v602, %v2087
    %v2089 = vpop.f32.mrb[0].mxu0
    %v2090 = vpop.f32.mrb[0].mxu0
    %2091 = vdwg.mxu0
    %2092 = vmatprep.subr.bf16.mxu0 %v1442
    %2093 = vmatpush1.bf16.msra.mxu0 %v1441
    %2094 = vmatprep.subr.bf16.mxu0 %v1446
    %2095 = vmatpush1.bf16.msra.mxu0 %v1445
    %2096 = vmatprep.subr.bf16.mxu0 %v1450
    %2097 = vmatpush1.bf16.msra.mxu0 %v1449
    %2098 = vmatprep.subr.bf16.mxu0 %v1454
    %2099 = vmatpush1.bf16.msra.mxu0 %v1453
    %2100 = vmatprep.subr.bf16.mxu0 %v1458
    %2101 = vmatpush1.bf16.msra.mxu0 %v1457
    %2102 = vmatprep.subr.bf16.mxu0 %v1462
    %2103 = vmatpush1.bf16.msra.mxu0 %v1461
    %2104 = vmatprep.subr.bf16.mxu0 %v1466
    %2105 = vmatpush1.bf16.msra.mxu0 %v1465
    %2106 = vmatprep.subr.bf16.mxu0 %v1470
    %2107 = vmatpush1.bf16.msra.mxu0 %v1469
    %2108 = vmatprep.subr.bf16.mxu0 %v1474
    %2109 = vmatpush1.bf16.msra.mxu0 %v1473
    %2110 = vmatprep.subr.bf16.mxu0 %v1478
    %2111 = vmatpush1.bf16.msra.mxu0 %v1477
    %2112 = vmatprep.subr.bf16.mxu0 %v1482
    %2113 = vmatpush1.bf16.msra.mxu0 %v1481
    %2114 = vmatprep.subr.bf16.mxu0 %v1486
    %2115 = vmatpush1.bf16.msra.mxu0 %v1485
    %2116 = vmatprep.subr.bf16.mxu0 %v1490
    %2117 = vmatpush1.bf16.msra.mxu0 %v1489
    %2118 = vmatprep.subr.bf16.mxu0 %v1494
    %2119 = vmatpush1.bf16.msra.mxu0 %v1493
    %2120 = vmatprep.subr.bf16.mxu0 %v1498
    %2121 = vmatpush1.bf16.msra.mxu0 %v1497
    %2122 = vmatprep.subr.bf16.mxu0 %v1502
    %2123 = vmatpush1.bf16.msra.mxu0 %v1501
    %2124 = vmatprep.mubr.bf16.mxu0 %v324
    %2125 = vmatmul.mubr.bf16.gmra.mrb[0].mxu0 %v323
    %v2126 = vpop.f32.mrb[0].mxu0
    %v2127 = vadd.f32 %v2086, %v2126
    %v2128 = vpop.f32.mrb[0].mxu0
    %v2129 = vadd.f32 %v2088, %v2128
    %v2130 = vpop.f32.mrb[0].mxu0
    %v2131 = vpop.f32.mrb[0].mxu0
    %2132 = vdwg.mxu0
    %2133 = vmatprep.subr.bf16.mxu0 %v1506
    %2134 = vmatpush1.bf16.msra.mxu0 %v1505
    %2135 = vmatprep.subr.bf16.mxu0 %v1510
    %2136 = vmatpush1.bf16.msra.mxu0 %v1509
    %2137 = vmatprep.subr.bf16.mxu0 %v1514
    %2138 = vmatpush1.bf16.msra.mxu0 %v1513
    %2139 = vmatprep.subr.bf16.mxu0 %v1518
    %2140 = vmatpush1.bf16.msra.mxu0 %v1517
    %2141 = vmatprep.subr.bf16.mxu0 %v1522
    %2142 = vmatpush1.bf16.msra.mxu0 %v1521
    %2143 = vmatprep.subr.bf16.mxu0 %v1526
    %2144 = vmatpush1.bf16.msra.mxu0 %v1525
    %2145 = vmatprep.subr.bf16.mxu0 %v1530
    %2146 = vmatpush1.bf16.msra.mxu0 %v1529
    %2147 = vmatprep.subr.bf16.mxu0 %v1534
    %2148 = vmatpush1.bf16.msra.mxu0 %v1533
    %2149 = vmatprep.subr.bf16.mxu0 %v1538
    %2150 = vmatpush1.bf16.msra.mxu0 %v1537
    %2151 = vmatprep.subr.bf16.mxu0 %v1542
    %2152 = vmatpush1.bf16.msra.mxu0 %v1541
    %2153 = vmatprep.subr.bf16.mxu0 %v1546
    %2154 = vmatpush1.bf16.msra.mxu0 %v1545
    %2155 = vmatprep.subr.bf16.mxu0 %v1550
    %2156 = vmatpush1.bf16.msra.mxu0 %v1549
    %2157 = vmatprep.subr.bf16.mxu0 %v1554
    %2158 = vmatpush1.bf16.msra.mxu0 %v1553
    %2159 = vmatprep.subr.bf16.mxu0 %v1558
    %2160 = vmatpush1.bf16.msra.mxu0 %v1557
    %2161 = vmatprep.subr.bf16.mxu0 %v1562
    %2162 = vmatpush1.bf16.msra.mxu0 %v1561
    %2163 = vmatprep.subr.bf16.mxu0 %v1566
    %2164 = vmatpush1.bf16.msra.mxu0 %v1565
    %2165 = vmatprep.mubr.bf16.mxu0 %v326
    %2166 = vmatmul.mubr.bf16.gmra.mrb[0].mxu0 %v325
    %v2167 = vpop.f32.mrb[0].mxu0
    %v2168 = vadd.f32 %v2127, %v2167
    %v2169 = vpop.f32.mrb[0].mxu0
    %v2170 = vadd.f32 %v2129, %v2169
    %v2171 = vpop.f32.mrb[0].mxu0
    %v2172 = vpop.f32.mrb[0].mxu0
    %2173 = vdwg.mxu0
    %2174 = vmatprep.subr.bf16.mxu0 %v1570
    %2175 = vmatpush1.bf16.msra.mxu0 %v1569
    %2176 = vmatprep.subr.bf16.mxu0 %v1574
    %2177 = vmatpush1.bf16.msra.mxu0 %v1573
    %2178 = vmatprep.subr.bf16.mxu0 %v1578
    %2179 = vmatpush1.bf16.msra.mxu0 %v1577
    %2180 = vmatprep.subr.bf16.mxu0 %v1582
    %2181 = vmatpush1.bf16.msra.mxu0 %v1581
    %2182 = vmatprep.subr.bf16.mxu0 %v1586
    %2183 = vmatpush1.bf16.msra.mxu0 %v1585
    %2184 = vmatprep.subr.bf16.mxu0 %v1590
    %2185 = vmatpush1.bf16.msra.mxu0 %v1589
    %2186 = vmatprep.subr.bf16.mxu0 %v1594
    %2187 = vmatpush1.bf16.msra.mxu0 %v1593
    %2188 = vmatprep.subr.bf16.mxu0 %v1598
    %2189 = vmatpush1.bf16.msra.mxu0 %v1597
    %2190 = vmatprep.subr.bf16.mxu0 %v1602
    %2191 = vmatpush1.bf16.msra.mxu0 %v1601
    %2192 = vmatprep.subr.bf16.mxu0 %v1606
    %2193 = vmatpush1.bf16.msra.mxu0 %v1605
    %2194 = vmatprep.subr.bf16.mxu0 %v1610
    %2195 = vmatpush1.bf16.msra.mxu0 %v1609
    %2196 = vmatprep.subr.bf16.mxu0 %v1614
    %2197 = vmatpush1.bf16.msra.mxu0 %v1613
    %2198 = vmatprep.subr.bf16.mxu0 %v1618
    %2199 = vmatpush1.bf16.msra.mxu0 %v1617
    %2200 = vmatprep.subr.bf16.mxu0 %v1622
    %2201 = vmatpush1.bf16.msra.mxu0 %v1621
    %2202 = vmatprep.subr.bf16.mxu0 %v1626
    %2203 = vmatpush1.bf16.msra.mxu0 %v1625
    %2204 = vmatprep.subr.bf16.mxu0 %v1630
    %2205 = vmatpush1.bf16.msra.mxu0 %v1629
    %2206 = vmatprep.mubr.bf16.mxu0 %v328
    %2207 = vmatmul.mubr.bf16.gmra.mrb[0].mxu0 %v327
    %v2208 = vpop.f32.mrb[0].mxu0
    %v2209 = vadd.f32 %v2168, %v2208
    %v2210 = vpop.f32.mrb[0].mxu0
    %v2211 = vadd.f32 %v2170, %v2210
    %v2212 = vpop.f32.mrb[0].mxu0
    %v2213 = vpop.f32.mrb[0].mxu0
    %2214 = vdwg.mxu0
    %v2215 = vmul.f32 %v2045, 0.5
    %v2216 = vmul.f32 %v2047, 0.5
    %v2217 = vmul.f32 %v2209, 0.5
    %v2218 = vmul.f32 %v2211, 0.5
    %v2219 = vmul.f32 %v2045, 0.70710677
    %v2220 = vmul.f32 %v2047, 0.70710677
    %v2221 = vmul.f32 %v2209, 0.70710677
    %v2222 = vmul.f32 %v2211, 0.70710677
    %v2223 = verf.f32.pop %v2219
    %v2224 = verf.f32.pop %v2220
    %v2225 = verf.f32.pop %v2221
    %v2226 = verf.f32.pop %v2222
    %v2227 = vadd.f32 %v2223, 1.0
    %v2228 = vadd.f32 %v2224, 1.0
    %v2229 = vadd.f32 %v2225, 1.0
    %v2230 = vadd.f32 %v2226, 1.0
    %v2231 = vmul.f32 %v2215, %v2227
    %v2232 = vmul.f32 %v2216, %v2228
    %v2233 = vmul.f32 %v2217, %v2229
    %v2234 = vmul.f32 %v2218, %v2230
    %v2235 = vpack.c.bf16 %v2231, %v2231
    %v2236 = vpack.c.bf16 %v2232, %v2232
    %v2237 = vpack.c.bf16 %v2233, %v2233
    %v2238 = vpack.c.bf16 %v2234, %v2234
    %v2239 = vld [vmem:[%s5] sm:$0xf]
    %v2240 = vld [vmem:[%s5 + $0x4] sm:$0xf]
    %v2241 = vld [vmem:[%s5 + $0x8] sm:$0xf]
    %v2242 = vld [vmem:[%s5 + $0xc] sm:$0xf]
    %v2243 = vld [vmem:[%s5 + $0x10] sm:$0xf]
    %v2244 = vld [vmem:[%s5 + $0x14] sm:$0xf]
    %v2245 = vld [vmem:[%s5 + $0x18] sm:$0xf]
    %v2246 = vld [vmem:[%s5 + $0x1c] sm:$0xf]
    %v2247 = vld [vmem:[%s5 + $0x20] sm:$0xf]
    %v2248 = vld [vmem:[%s5 + $0x24] sm:$0xf]
    %v2249 = vld [vmem:[%s5 + $0x28] sm:$0xf]
    %v2250 = vld [vmem:[%s5 + $0x2c] sm:$0xf]
    %v2251 = vld [vmem:[%s5 + $0x30] sm:$0xf]
    %v2252 = vld [vmem:[%s5 + $0x34] sm:$0xf]
    %v2253 = vld [vmem:[%s5 + $0x38] sm:$0xf]
    %v2254 = vld [vmem:[%s5 + $0x3c] sm:$0xf]
    %v2255 = vld [vmem:[%s5 + $0x40] sm:$0xf]
    %v2256 = vld [vmem:[%s5 + $0x44] sm:$0xf]
    %v2257 = vld [vmem:[%s5 + $0x48] sm:$0xf]
    %v2258 = vld [vmem:[%s5 + $0x4c] sm:$0xf]
    %v2259 = vld [vmem:[%s5 + $0x50] sm:$0xf]
    %v2260 = vld [vmem:[%s5 + $0x54] sm:$0xf]
    %v2261 = vld [vmem:[%s5 + $0x58] sm:$0xf]
    %v2262 = vld [vmem:[%s5 + $0x5c] sm:$0xf]
    %v2263 = vld [vmem:[%s5 + $0x60] sm:$0xf]
    %v2264 = vld [vmem:[%s5 + $0x64] sm:$0xf]
    %v2265 = vld [vmem:[%s5 + $0x68] sm:$0xf]
    %v2266 = vld [vmem:[%s5 + $0x6c] sm:$0xf]
    %v2267 = vld [vmem:[%s5 + $0x70] sm:$0xf]
    %v2268 = vld [vmem:[%s5 + $0x74] sm:$0xf]
    %v2269 = vld [vmem:[%s5 + $0x78] sm:$0xf]
    %v2270 = vld [vmem:[%s5 + $0x7c] sm:$0xf]
    %v2271 = vld [vmem:[%s5 + $0x80] sm:$0xf]
    %v2272 = vld [vmem:[%s5 + $0x84] sm:$0xf]
    %v2273 = vld [vmem:[%s5 + $0x88] sm:$0xf]
    %v2274 = vld [vmem:[%s5 + $0x8c] sm:$0xf]
    %v2275 = vld [vmem:[%s5 + $0x90] sm:$0xf]
    %v2276 = vld [vmem:[%s5 + $0x94] sm:$0xf]
    %v2277 = vld [vmem:[%s5 + $0x98] sm:$0xf]
    %v2278 = vld [vmem:[%s5 + $0x9c] sm:$0xf]
    %v2279 = vld [vmem:[%s5 + $0xa0] sm:$0xf]
    %v2280 = vld [vmem:[%s5 + $0xa4] sm:$0xf]
    %v2281 = vld [vmem:[%s5 + $0xa8] sm:$0xf]
    %v2282 = vld [vmem:[%s5 + $0xac] sm:$0xf]
    %v2283 = vld [vmem:[%s5 + $0xb0] sm:$0xf]
    %v2284 = vld [vmem:[%s5 + $0xb4] sm:$0xf]
    %v2285 = vld [vmem:[%s5 + $0xb8] sm:$0xf]
    %v2286 = vld [vmem:[%s5 + $0xbc] sm:$0xf]
    %v2287 = vld [vmem:[%s5 + $0xc0] sm:$0xf]
    %v2288 = vld [vmem:[%s5 + $0xc4] sm:$0xf]
    %v2289 = vld [vmem:[%s5 + $0xc8] sm:$0xf]
    %v2290 = vld [vmem:[%s5 + $0xcc] sm:$0xf]
    %v2291 = vld [vmem:[%s5 + $0xd0] sm:$0xf]
    %v2292 = vld [vmem:[%s5 + $0xd4] sm:$0xf]
    %v2293 = vld [vmem:[%s5 + $0xd8] sm:$0xf]
    %v2294 = vld [vmem:[%s5 + $0xdc] sm:$0xf]
    %v2295 = vld [vmem:[%s5 + $0xe0] sm:$0xf]
    %v2296 = vld [vmem:[%s5 + $0xe4] sm:$0xf]
    %v2297 = vld [vmem:[%s5 + $0xe8] sm:$0xf]
    %v2298 = vld [vmem:[%s5 + $0xec] sm:$0xf]
    %v2299 = vld [vmem:[%s5 + $0xf0] sm:$0xf]
    %v2300 = vld [vmem:[%s5 + $0xf4] sm:$0xf]
    %v2301 = vld [vmem:[%s5 + $0xf8] sm:$0xf]
    %v2302 = vld [vmem:[%s5 + $0xfc] sm:$0xf]
    %v2303 = vld [vmem:[%s6] sm:$0x1]
    %v2305 = vlaneseq
    %v2306 = vshrl.u32 %v2305, 7
    %v2307 = vsub.s32 0, %v2306
    %v2308 = vrot.slane %v2303, %v2307
    %v2374 = vunpack.c.l.b16 %v2239
    %v2375 = vunpack.c.l.b16 %v2240
    %v2376 = vunpack.c.l.b16 %v2241
    %v2377 = vunpack.c.l.b16 %v2242
    %v2378 = vunpack.c.l.b16 %v2243
    %v2379 = vunpack.c.l.b16 %v2244
    %v2380 = vunpack.c.l.b16 %v2245
    %v2381 = vunpack.c.l.b16 %v2246
    %v2382 = vunpack.c.l.b16 %v2247
    %v2383 = vunpack.c.l.b16 %v2248
    %v2384 = vunpack.c.l.b16 %v2249
    %v2385 = vunpack.c.l.b16 %v2250
    %v2386 = vunpack.c.l.b16 %v2251
    %v2387 = vunpack.c.l.b16 %v2252
    %v2388 = vunpack.c.l.b16 %v2253
    %v2389 = vunpack.c.l.b16 %v2254
    %v2390 = vunpack.c.l.b16 %v2255
    %v2391 = vunpack.c.l.b16 %v2256
    %v2392 = vunpack.c.l.b16 %v2257
    %v2393 = vunpack.c.l.b16 %v2258
    %v2394 = vunpack.c.l.b16 %v2259
    %v2395 = vunpack.c.l.b16 %v2260
    %v2396 = vunpack.c.l.b16 %v2261
    %v2397 = vunpack.c.l.b16 %v2262
    %v2398 = vunpack.c.l.b16 %v2263
    %v2399 = vunpack.c.l.b16 %v2264
    %v2400 = vunpack.c.l.b16 %v2265
    %v2401 = vunpack.c.l.b16 %v2266
    %v2402 = vunpack.c.l.b16 %v2267
    %v2403 = vunpack.c.l.b16 %v2268
    %v2404 = vunpack.c.l.b16 %v2269
    %v2405 = vunpack.c.l.b16 %v2270
    %v2406 = vunpack.c.l.b16 %v2271
    %v2407 = vunpack.c.l.b16 %v2272
    %v2408 = vunpack.c.l.b16 %v2273
    %v2409 = vunpack.c.l.b16 %v2274
    %v2410 = vunpack.c.l.b16 %v2275
    %v2411 = vunpack.c.l.b16 %v2276
    %v2412 = vunpack.c.l.b16 %v2277
    %v2413 = vunpack.c.l.b16 %v2278
    %v2414 = vunpack.c.l.b16 %v2279
    %v2415 = vunpack.c.l.b16 %v2280
    %v2416 = vunpack.c.l.b16 %v2281
    %v2417 = vunpack.c.l.b16 %v2282
    %v2418 = vunpack.c.l.b16 %v2283
    %v2419 = vunpack.c.l.b16 %v2284
    %v2420 = vunpack.c.l.b16 %v2285
    %v2421 = vunpack.c.l.b16 %v2286
    %v2422 = vunpack.c.l.b16 %v2287
    %v2423 = vunpack.c.l.b16 %v2288
    %v2424 = vunpack.c.l.b16 %v2289
    %v2425 = vunpack.c.l.b16 %v2290
    %v2426 = vunpack.c.l.b16 %v2291
    %v2427 = vunpack.c.l.b16 %v2292
    %v2428 = vunpack.c.l.b16 %v2293
    %v2429 = vunpack.c.l.b16 %v2294
    %v2430 = vunpack.c.l.b16 %v2295
    %v2431 = vunpack.c.l.b16 %v2296
    %v2432 = vunpack.c.l.b16 %v2297
    %v2433 = vunpack.c.l.b16 %v2298
    %v2434 = vunpack.c.l.b16 %v2299
    %v2435 = vunpack.c.l.b16 %v2300
    %v2436 = vunpack.c.l.b16 %v2301
    %v2437 = vunpack.c.l.b16 %v2302
    %v2438 = vpack.c.b16 %v2375, %v2374
    %v2439 = vpack.c.b16 %v2377, %v2376
    %v2440 = vpack.c.b16 %v2379, %v2378
    %v2441 = vpack.c.b16 %v2381, %v2380
    %v2442 = vpack.c.b16 %v2383, %v2382
    %v2443 = vpack.c.b16 %v2385, %v2384
    %v2444 = vpack.c.b16 %v2387, %v2386
    %v2445 = vpack.c.b16 %v2389, %v2388
    %v2446 = vpack.c.b16 %v2391, %v2390
    %v2447 = vpack.c.b16 %v2393, %v2392
    %v2448 = vpack.c.b16 %v2395, %v2394
    %v2449 = vpack.c.b16 %v2397, %v2396
    %v2450 = vpack.c.b16 %v2399, %v2398
    %v2451 = vpack.c.b16 %v2401, %v2400
    %v2452 = vpack.c.b16 %v2403, %v2402
    %v2453 = vpack.c.b16 %v2405, %v2404
    %v2454 = vpack.c.b16 %v2407, %v2406
    %v2455 = vpack.c.b16 %v2409, %v2408
    %v2456 = vpack.c.b16 %v2411, %v2410
    %v2457 = vpack.c.b16 %v2413, %v2412
    %v2458 = vpack.c.b16 %v2415, %v2414
    %v2459 = vpack.c.b16 %v2417, %v2416
    %v2460 = vpack.c.b16 %v2419, %v2418
    %v2461 = vpack.c.b16 %v2421, %v2420
    %v2462 = vpack.c.b16 %v2423, %v2422
    %v2463 = vpack.c.b16 %v2425, %v2424
    %v2464 = vpack.c.b16 %v2427, %v2426
    %v2465 = vpack.c.b16 %v2429, %v2428
    %v2466 = vpack.c.b16 %v2431, %v2430
    %v2467 = vpack.c.b16 %v2433, %v2432
    %v2468 = vpack.c.b16 %v2435, %v2434
    %v2469 = vpack.c.b16 %v2437, %v2436
    %2502 = vmatprep.subr.bf16.mxu0 0
    %2503 = vmatpush1.bf16.msra.mxu0 %v2438
    %2504 = vmatprep.subr.bf16.mxu0 0
    %2505 = vmatpush1.bf16.msra.mxu0 %v2439
    %2506 = vmatprep.subr.bf16.mxu0 0
    %2507 = vmatpush1.bf16.msra.mxu0 %v2440
    %2508 = vmatprep.subr.bf16.mxu0 0
    %2509 = vmatpush1.bf16.msra.mxu0 %v2441
    %2510 = vmatprep.subr.bf16.mxu0 0
    %2511 = vmatpush1.bf16.msra.mxu0 %v2442
    %2512 = vmatprep.subr.bf16.mxu0 0
    %2513 = vmatpush1.bf16.msra.mxu0 %v2443
    %2514 = vmatprep.subr.bf16.mxu0 0
    %2515 = vmatpush1.bf16.msra.mxu0 %v2444
    %2516 = vmatprep.subr.bf16.mxu0 0
    %2517 = vmatpush1.bf16.msra.mxu0 %v2445
    %2518 = vmatprep.subr.bf16.mxu0 0
    %2519 = vmatpush1.bf16.msra.mxu0 %v2446
    %2520 = vmatprep.subr.bf16.mxu0 0
    %2521 = vmatpush1.bf16.msra.mxu0 %v2447
    %2522 = vmatprep.subr.bf16.mxu0 0
    %2523 = vmatpush1.bf16.msra.mxu0 %v2448
    %2524 = vmatprep.subr.bf16.mxu0 0
    %2525 = vmatpush1.bf16.msra.mxu0 %v2449
    %2526 = vmatprep.subr.bf16.mxu0 0
    %2527 = vmatpush1.bf16.msra.mxu0 %v2450
    %2528 = vmatprep.subr.bf16.mxu0 0
    %2529 = vmatpush1.bf16.msra.mxu0 %v2451
    %2530 = vmatprep.subr.bf16.mxu0 0
    %2531 = vmatpush1.bf16.msra.mxu0 %v2452
    %2532 = vmatprep.subr.bf16.mxu0 0
    %2533 = vmatpush1.bf16.msra.mxu0 %v2453
    %2534 = vmatprep.mubr.bf16.mxu0 %v2236
    %2535 = vmatmul.mubr.bf16.gmra.mrb[0].mxu0 %v2235
    %v2536 = vpop.f32.mrb[0].mxu0
    %v2537 = vadd.f32 %v2308, %v2536
    %v2538 = vpop.f32.mrb[0].mxu0
    %v2539 = vpop.f32.mrb[0].mxu0
    %v2540 = vpop.f32.mrb[0].mxu0
    %2541 = vdwg.mxu0
    %2542 = vmatprep.subr.bf16.mxu0 0
    %2543 = vmatpush1.bf16.msra.mxu0 %v2454
    %2544 = vmatprep.subr.bf16.mxu0 0
    %2545 = vmatpush1.bf16.msra.mxu0 %v2455
    %2546 = vmatprep.subr.bf16.mxu0 0
    %2547 = vmatpush1.bf16.msra.mxu0 %v2456
    %2548 = vmatprep.subr.bf16.mxu0 0
    %2549 = vmatpush1.bf16.msra.mxu0 %v2457
    %2550 = vmatprep.subr.bf16.mxu0 0
    %2551 = vmatpush1.bf16.msra.mxu0 %v2458
    %2552 = vmatprep.subr.bf16.mxu0 0
    %2553 = vmatpush1.bf16.msra.mxu0 %v2459
    %2554 = vmatprep.subr.bf16.mxu0 0
    %2555 = vmatpush1.bf16.msra.mxu0 %v2460
    %2556 = vmatprep.subr.bf16.mxu0 0
    %2557 = vmatpush1.bf16.msra.mxu0 %v2461
    %2558 = vmatprep.subr.bf16.mxu0 0
    %2559 = vmatpush1.bf16.msra.mxu0 %v2462
    %2560 = vmatprep.subr.bf16.mxu0 0
    %2561 = vmatpush1.bf16.msra.mxu0 %v2463
    %2562 = vmatprep.subr.bf16.mxu0 0
    %2563 = vmatpush1.bf16.msra.mxu0 %v2464
    %2564 = vmatprep.subr.bf16.mxu0 0
    %2565 = vmatpush1.bf16.msra.mxu0 %v2465
    %2566 = vmatprep.subr.bf16.mxu0 0
    %2567 = vmatpush1.bf16.msra.mxu0 %v2466
    %2568 = vmatprep.subr.bf16.mxu0 0
    %2569 = vmatpush1.bf16.msra.mxu0 %v2467
    %2570 = vmatprep.subr.bf16.mxu0 0
    %2571 = vmatpush1.bf16.msra.mxu0 %v2468
    %2572 = vmatprep.subr.bf16.mxu0 0
    %2573 = vmatpush1.bf16.msra.mxu0 %v2469
    %2574 = vmatprep.mubr.bf16.mxu0 %v2238
    %2575 = vmatmul.mubr.bf16.gmra.mrb[0].mxu0 %v2237
    %v2576 = vpop.f32.mrb[0].mxu0
    %v2577 = vadd.f32 %v2537, %v2576
    %v2578 = vpop.f32.mrb[0].mxu0
    %v2579 = vpop.f32.mrb[0].mxu0
    %v2580 = vpop.f32.mrb[0].mxu0
    %2581 = vdwg.mxu0
    %vm2582 = vcmask 254976
    %v2583 = vsel %vm2582, %v2577, -inf
    %2584 = vmax.xlane.f32.xlu0 %v2583
    %v2585 = vpop.xlane.xlu0 %2584
    %v2586 = vsub.f32 %v2577, %v2585
    %v2587 = vmul.f32 %v2586, 1.442695
    %v2588 = vpow.pop %v2587
    %v2589 = vsel %vm2582, %v2588, 0.0
    %2590 = vadd.xlane.f32.xlu0 %v2589
    %v2591 = vpop.xlane.xlu0 %2590
    %v2592 = vrcp.pop %v2591
    %v2593 = vmul.f32 %v2588, %v2592
    %v2594 = vpack.c.bf16 %v2593, %v2593
    %v2595 = vld [vmem:[%s7] sm:$0xf]
    %v2596 = vld [vmem:[%s7 + $0x4] sm:$0xf]
    %v2597 = vld [vmem:[%s7 + $0x8] sm:$0xf]
    %v2598 = vld [vmem:[%s7 + $0xc] sm:$0xf]
    %v2603 = vunpack.c.l.b16 %v2595
    %v2604 = vunpack.c.l.b16 %v2596
    %v2605 = vunpack.c.l.b16 %v2597
    %v2606 = vunpack.c.l.b16 %v2598
    %v2607 = vpack.c.b16 %v2604, %v2603
    %v2608 = vpack.c.b16 %v2606, %v2605
    %vm2611 = vcmask 261120
    %v2613 = vsel %vm2611, %v2594, 0
    %2615 = vmatprep.subr.bf16.mxu0 0
    %2616 = vmatpush1.bf16.msra.mxu0 %v2607
    %2617 = vmatprep.subr.bf16.mxu0 0
    %2618 = vmatpush1.bf16.msra.mxu0 %v2608
    %2619 = vmatprep.subr.bf16.mxu0 0
    %2620 = vmatpush1.bf16.msra.mxu0 0
    %2621 = vmatprep.subr.bf16.mxu0 0
    %2622 = vmatpush1.bf16.msra.mxu0 0
    %2623 = vmatprep.subr.bf16.mxu0 0
    %2624 = vmatpush1.bf16.msra.mxu0 0
    %2625 = vmatprep.subr.bf16.mxu0 0
    %2626 = vmatpush1.bf16.msra.mxu0 0
    %2627 = vmatprep.subr.bf16.mxu0 0
    %2628 = vmatpush1.bf16.msra.mxu0 0
    %2629 = vmatprep.subr.bf16.mxu0 0
    %2630 = vmatpush1.bf16.msra.mxu0 0
    %2631 = vmatprep.subr.bf16.mxu0 0
    %2632 = vmatpush1.bf16.msra.mxu0 0
    %2633 = vmatprep.subr.bf16.mxu0 0
    %2634 = vmatpush1.bf16.msra.mxu0 0
    %2635 = vmatprep.subr.bf16.mxu0 0
    %2636 = vmatpush1.bf16.msra.mxu0 0
    %2637 = vmatprep.subr.bf16.mxu0 0
    %2638 = vmatpush1.bf16.msra.mxu0 0
    %2639 = vmatprep.subr.bf16.mxu0 0
    %2640 = vmatpush1.bf16.msra.mxu0 0
    %2641 = vmatprep.subr.bf16.mxu0 0
    %2642 = vmatpush1.bf16.msra.mxu0 0
    %2643 = vmatprep.subr.bf16.mxu0 0
    %2644 = vmatpush1.bf16.msra.mxu0 0
    %2645 = vmatprep.subr.bf16.mxu0 0
    %2646 = vmatpush1.bf16.msra.mxu0 0
    %2647 = vmatprep.mubr.bf16.mxu0 0
    %2648 = vmatmul.mubr.bf16.gmra.mrb[0].mxu0 %v2613
    %v2649 = vpop.f32.mrb[0].mxu0
    %v2650 = vadd.f32 0.0, %v2649
    %v2651 = vpop.f32.mrb[0].mxu0
    %v2652 = vpop.f32.mrb[0].mxu0
    %v2653 = vpop.f32.mrb[0].mxu0
    %2654 = vdwg.mxu0
    %v2655 = vpack.c.bf16 %v2650, %v2650
    %v2656 = vld [vmem:[%s8] sm:$0xf]
    %v2657 = vld [vmem:[%s8 + $0x4] sm:$0xf]
    %v2658 = vld [vmem:[%s8 + $0x8] sm:$0xf]
    %v2659 = vld [vmem:[%s8 + $0xc] sm:$0xf]
    %v2660 = vld [vmem:[%s8 + $0x10] sm:$0xf]
    %v2661 = vld [vmem:[%s8 + $0x14] sm:$0xf]
    %v2662 = vld [vmem:[%s8 + $0x18] sm:$0xf]
    %v2663 = vld [vmem:[%s8 + $0x1c] sm:$0xf]
    %v2664 = vld [vmem:[%s9] sm:$0x1]
    %v2666 = vlaneseq
    %v2667 = vshrl.u32 %v2666, 7
    %v2668 = vsub.s32 0, %v2667
    %v2669 = vrot.slane %v2664, %v2668
    %v2679 = vunpack.c.l.b16 %v2656
    %v2680 = vunpack.c.l.b16 %v2657
    %v2681 = vunpack.c.l.b16 %v2658
    %v2682 = vunpack.c.l.b16 %v2659
    %v2683 = vunpack.c.l.b16 %v2660
    %v2684 = vunpack.c.l.b16 %v2661
    %v2685 = vunpack.c.l.b16 %v2662
    %v2686 = vunpack.c.l.b16 %v2663
    %v2687 = vpack.c.b16 %v2680, %v2679
    %v2688 = vpack.c.b16 %v2682, %v2681
    %v2689 = vpack.c.b16 %v2684, %v2683
    %v2690 = vpack.c.b16 %v2686, %v2685
    %vm2695 = vcmask 523264
    %v2697 = vsel %vm2695, %v2655, 0
    %2699 = vmatprep.subr.bf16.mxu0 0
    %2700 = vmatpush1.bf16.msra.mxu0 %v2687
    %2701 = vmatprep.subr.bf16.mxu0 0
    %2702 = vmatpush1.bf16.msra.mxu0 %v2688
    %2703 = vmatprep.subr.bf16.mxu0 0
    %2704 = vmatpush1.bf16.msra.mxu0 %v2689
    %2705 = vmatprep.subr.bf16.mxu0 0
    %2706 = vmatpush1.bf16.msra.mxu0 %v2690
    %2707 = vmatprep.subr.bf16.mxu0 0
    %2708 = vmatpush1.bf16.msra.mxu0 0
    %2709 = vmatprep.subr.bf16.mxu0 0
    %2710 = vmatpush1.bf16.msra.mxu0 0
    %2711 = vmatprep.subr.bf16.mxu0 0
    %2712 = vmatpush1.bf16.msra.mxu0 0
    %2713 = vmatprep.subr.bf16.mxu0 0
    %2714 = vmatpush1.bf16.msra.mxu0 0
    %2715 = vmatprep.subr.bf16.mxu0 0
    %2716 = vmatpush1.bf16.msra.mxu0 0
    %2717 = vmatprep.subr.bf16.mxu0 0
    %2718 = vmatpush1.bf16.msra.mxu0 0
    %2719 = vmatprep.subr.bf16.mxu0 0
    %2720 = vmatpush1.bf16.msra.mxu0 0
    %2721 = vmatprep.subr.bf16.mxu0 0
    %2722 = vmatpush1.bf16.msra.mxu0 0
    %2723 = vmatprep.subr.bf16.mxu0 0
    %2724 = vmatpush1.bf16.msra.mxu0 0
    %2725 = vmatprep.subr.bf16.mxu0 0
    %2726 = vmatpush1.bf16.msra.mxu0 0
    %2727 = vmatprep.subr.bf16.mxu0 0
    %2728 = vmatpush1.bf16.msra.mxu0 0
    %2729 = vmatprep.subr.bf16.mxu0 0
    %2730 = vmatpush1.bf16.msra.mxu0 0
    %2731 = vmatprep.mubr.bf16.mxu0 0
    %2732 = vmatmul.mubr.bf16.gmra.mrb[0].mxu0 %v2697
    %v2733 = vpop.f32.mrb[0].mxu0
    %v2734 = vadd.f32 %v2669, %v2733
    %v2735 = vpop.f32.mrb[0].mxu0
    %v2736 = vpop.f32.mrb[0].mxu0
    %v2737 = vpop.f32.mrb[0].mxu0
    %2738 = vdwg.mxu0
    %v2739 = vmul.f32 %v2734, 0.5
    %v2740 = vmul.f32 %v2734, 0.70710677
    %v2741 = verf.f32.pop %v2740
    %v2742 = vadd.f32 %v2741, 1.0
    %v2743 = vmul.f32 %v2739, %v2742
    %v2744 = vpack.c.bf16 %v2743, %v2743
    %v2745 = vld [vmem:[%s10] sm:$0xf]
    %v2746 = vld [vmem:[%s10 + $0x4] sm:$0xf]
    %v2747 = vld [vmem:[%s10 + $0x8] sm:$0xf]
    %v2748 = vld [vmem:[%s10 + $0xc] sm:$0xf]
    %v2749 = vld [vmem:[%s10 + $0x10] sm:$0xf]
    %v2750 = vld [vmem:[%s10 + $0x14] sm:$0xf]
    %v2751 = vld [vmem:[%s10 + $0x18] sm:$0xf]
    %v2752 = vld [vmem:[%s10 + $0x1c] sm:$0xf]
    %v2753 = vld [vmem:[%s11] sm:$0x1]
    %v2755 = vlaneseq
    %v2756 = vshrl.u32 %v2755, 7
    %v2757 = vsub.s32 0, %v2756
    %v2758 = vrot.slane %v2753, %v2757
    %v2768 = vunpack.c.l.b16 %v2745
    %v2769 = vunpack.c.l.b16 %v2746
    %v2770 = vunpack.c.l.b16 %v2747
    %v2771 = vunpack.c.l.b16 %v2748
    %v2772 = vunpack.c.l.b16 %v2749
    %v2773 = vunpack.c.l.b16 %v2750
    %v2774 = vunpack.c.l.b16 %v2751
    %v2775 = vunpack.c.l.b16 %v2752
    %v2776 = vpack.c.b16 %v2769, %v2768
    %v2777 = vpack.c.b16 %v2771, %v2770
    %v2778 = vpack.c.b16 %v2773, %v2772
    %v2779 = vpack.c.b16 %v2775, %v2774
    %v2785 = vsel %vm2695, %v2744, 0
    %2787 = vmatprep.subr.bf16.mxu0 0
    %2788 = vmatpush1.bf16.msra.mxu0 %v2776
    %2789 = vmatprep.subr.bf16.mxu0 0
    %2790 = vmatpush1.bf16.msra.mxu0 %v2777
    %2791 = vmatprep.subr.bf16.mxu0 0
    %2792 = vmatpush1.bf16.msra.mxu0 %v2778
    %2793 = vmatprep.subr.bf16.mxu0 0
    %2794 = vmatpush1.bf16.msra.mxu0 %v2779
    %2795 = vmatprep.subr.bf16.mxu0 0
    %2796 = vmatpush1.bf16.msra.mxu0 0
    %2797 = vmatprep.subr.bf16.mxu0 0
    %2798 = vmatpush1.bf16.msra.mxu0 0
    %2799 = vmatprep.subr.bf16.mxu0 0
    %2800 = vmatpush1.bf16.msra.mxu0 0
    %2801 = vmatprep.subr.bf16.mxu0 0
    %2802 = vmatpush1.bf16.msra.mxu0 0
    %2803 = vmatprep.subr.bf16.mxu0 0
    %2804 = vmatpush1.bf16.msra.mxu0 0
    %2805 = vmatprep.subr.bf16.mxu0 0
    %2806 = vmatpush1.bf16.msra.mxu0 0
    %2807 = vmatprep.subr.bf16.mxu0 0
    %2808 = vmatpush1.bf16.msra.mxu0 0
    %2809 = vmatprep.subr.bf16.mxu0 0
    %2810 = vmatpush1.bf16.msra.mxu0 0
    %2811 = vmatprep.subr.bf16.mxu0 0
    %2812 = vmatpush1.bf16.msra.mxu0 0
    %2813 = vmatprep.subr.bf16.mxu0 0
    %2814 = vmatpush1.bf16.msra.mxu0 0
    %2815 = vmatprep.subr.bf16.mxu0 0
    %2816 = vmatpush1.bf16.msra.mxu0 0
    %2817 = vmatprep.subr.bf16.mxu0 0
    %2818 = vmatpush1.bf16.msra.mxu0 0
    %2819 = vmatprep.mubr.bf16.mxu0 0
    %2820 = vmatmul.mubr.bf16.gmra.mrb[0].mxu0 %v2785
    %v2821 = vpop.f32.mrb[0].mxu0
    %v2822 = vadd.f32 %v2758, %v2821
    %v2823 = vpop.f32.mrb[0].mxu0
    %v2824 = vpop.f32.mrb[0].mxu0
    %v2825 = vpop.f32.mrb[0].mxu0
    %2826 = vdwg.mxu0
    %v2827 = vld [vmem:[%s12] sm:$0x1]
    %v2829 = vlaneseq
    %v2830 = vshrl.u32 %v2829, 7
    %v2831 = vsub.s32 0, %v2830
    %v2832 = vrot.slane %v2827, %v2831
    %v2834 = vmul.f32 %v2832, %v2822
    %v2835 = vadd.f32 %v2650, %v2834
    %vm2836 = vcmask 517120
    %2837 = vst.msk [vmem:[#allocation5] sm:$0x3] %vm2836, %v2835
    // Predicated region
    $region58: #{cide_forward.1} parent=1 // pred_check
      _
    $region59: #{cide_forward.1} parent=1 // pred_check_branch
      %2839 = sbr.rel (0) target = $region61
    $region60: #{cide_forward.1} parent=1 // pred_region
      %s2841 = ssub.s32 32, 32
      %2842 = vsyncadd [#allocation4], %s2841
      %s2844 = sshll.u32 [#allocation5], 4
      %s2845 = int_to_ptr.vmem [resolvable:$true] %s2844
      %2847 = dma.vmem_to_hbm [thread:$0]  %s2845, 32, %s13, [#allocation4]
    $region61: #{cide_forward.1} parent=1 // pred_fallthru
      _
    // Predicated region
    $region62: #{cide_forward.1} parent=1 // pred_check
      _
    $region63: #{cide_forward.1} parent=1 // pred_check_branch
      %2849 = sbr.rel (0) target = $region65
    $region64: #{cide_forward.1} parent=1 // pred_region
      %2850 = dma.done [#allocation4], 32
    $region65: #{cide_forward.1} parent=1 // pred_fallthru
      _
    %2851 = vsyncpa [#allocation3], 1
    %2852 = vsyncpa [#allocation4], 1

</llo_original>
